<compile_context>
chip_gen: v7x
topology: tpu7x:2x2x1
jax: 0.10.0
libtpu: 0.0.40
codegen_flags: <defaults>
</compile_context>

<pallas_src>
import functools
import numpy as np
import jax
import jax.numpy as jnp
from jax import lax
from jax.experimental import pallas as pl
from jax.experimental.pallas import tpu as pltpu


# ----------------------------------------------------------------------------
# Tiling / VMEM sizing helpers
# ----------------------------------------------------------------------------
def _round_up(x, m):
    return ((x + m - 1) // m) * m


def _choose_tiling(L):
    """Return (L_pad, row_tile). Pad seq to sublane multiple; tile when long."""
    L8 = _round_up(L, 8)
    if L8 <= 256:
        return L8, L8                 # single tile: whole (padded) sequence
    return _round_up(L, 128), 128     # lane/MXU friendly query tiles


def _vmem_cap_bytes():
    try:
        info = pltpu.get_tpu_info()
        cap = getattr(info, "vmem_capacity_bytes", None)
        if cap:
            return int(cap)
    except Exception:
        pass
    return 128 << 20                  # conservative default (v5e/v6e physical)


def _vmem_limit_bytes(L, E, n_head, tile, has_mask, io_itemsize):
    H = n_head
    wb = 2 * (12 * E * E)                       # bf16 weights, resident, single-buffered
    sb = 4 * (4 * E + 2 * 3 * E + 2 * 4 * E)    # LN params + biases (f32)
    mb = 4 * L * L if has_mask else 0           # resident additive mask
    io = 2 * 2 * L * E * io_itemsize            # x + out blocks (double-buffered)
    scr = 2 * L * 3 * E                         # bf16 qkv scratch
    kv = 2 * 2 * L * E                          # bf16 K/V head-major copies
    act = 4 * (2 * H * tile * L + 2 * tile * 4 * E + 8 * tile * E)  # per-tile f32 live
    need = int(1.3 * (wb + sb + mb + io + scr + kv + act)) + (2 << 20)
    cap = _vmem_cap_bytes()                     # 64 MiB on v7x, 128 MiB on v5e/v6e
    return int(min(max(need, 16 << 20), (cap * 4) // 5))


# ----------------------------------------------------------------------------
# Kernel: one ResidualAttentionBlock for one batch element (row/query tiled).
# ----------------------------------------------------------------------------
def _resblock_kernel(*refs, n_head, n_tiles, tile, has_mask):
    if has_mask:
        (x_ref, mask_ref,
         ln1_w_ref, ln1_b_ref, wqkv_ref, bqkv_ref, wo_ref, bo_ref,
         ln2_w_ref, ln2_b_ref, wfc_ref, bfc_ref, wpr_ref, bpr_ref,
         out_ref, qkv_scr) = refs
    else:
        (x_ref,
         ln1_w_ref, ln1_b_ref, wqkv_ref, bqkv_ref, wo_ref, bo_ref,
         ln2_w_ref, ln2_b_ref, wfc_ref, bfc_ref, wpr_ref, bpr_ref,
         out_ref, qkv_scr) = refs
        mask_ref = None

    L, E = x_ref.shape                 # (L_pad, E), batch dim squeezed by BlockSpec
    H = n_head
    D = E // H

    def row_start(t):
        r0 = t * tile
        if not isinstance(r0, int):
            r0 = pl.multiple_of(r0, tile)
        return r0

    def layer_norm(v, w, b):
        # Centered two-moment form (robust vs E[x^2]-mu^2 cancellation).
        mu = jnp.mean(v, axis=-1, keepdims=True)
        c = v - mu
        var = jnp.mean(c * c, axis=-1, keepdims=True)
        return c * lax.rsqrt(var + 1e-5) * w + b

    # ---- pass 1: LN1 + fused QKV projection, row-tiled --------------------
    # 1/sqrt(D) is already folded into the Q columns of wqkv/bqkv (host prep).
    def qkv_tile(t):
        r0 = row_start(t)
        xt = x_ref[pl.ds(r0, tile), :].astype(jnp.float32)
        ht = layer_norm(xt, ln1_w_ref[0], ln1_b_ref[0]).astype(jnp.bfloat16)
        qkvt = jnp.dot(ht, wqkv_ref[...],
                       preferred_element_type=jnp.float32) + bqkv_ref[0]
        qkv_scr[pl.ds(r0, tile), :] = qkvt.astype(jnp.bfloat16)

    if n_tiles == 1:
        qkv_tile(0)
    else:
        lax.fori_loop(0, n_tiles, lambda t, c: (qkv_tile(t), c)[1], 0)

    # Keys / values for the whole (padded) sequence, head-major, bf16.
    # (Relayout happens on bf16 data — half the XLU bytes of the f32 version.)
    k_all = jnp.transpose(qkv_scr[:, E:2 * E].reshape(L, H, D), (1, 0, 2))   # (H,L,D)
    v_all = jnp.transpose(qkv_scr[:, 2 * E:3 * E].reshape(L, H, D), (1, 0, 2))

    # ---- pass 2: attention (query-tiled) + out-proj + residual + MLP -------
    def attn_mlp_tile(t):
        r0 = row_start(t)
        q_t = jnp.transpose(
            qkv_scr[pl.ds(r0, tile), 0:E].reshape(tile, H, D), (1, 0, 2))    # (H,tile,D)

        # scores: (H, tile, L); batched over heads, contraction over D.
        s = lax.dot_general(q_t, k_all, (((2,), (2,)), ((0,), (0,))),
                            preferred_element_type=jnp.float32)
        if has_mask:
            s = s + mask_ref[pl.ds(r0, tile), :][None, :, :]
        s = s - jnp.max(s, axis=-1, keepdims=True)
        p = jnp.exp(s)
        p = p * pl.reciprocal(jnp.sum(p, axis=-1, keepdims=True), approx=True)

        # context: (H, tile, D); batched over heads, contraction over keys.
        ctx = lax.dot_general(p.astype(jnp.bfloat16), v_all,
                              (((2,), (1,)), ((0,), (0,))),
                              preferred_element_type=jnp.float32)
        attn_in = jnp.transpose(ctx.astype(jnp.bfloat16), (1, 0, 2)).reshape(tile, E)
        attn = jnp.dot(attn_in, wo_ref[...],
                       preferred_element_type=jnp.float32) + bo_ref[0]

        xt = x_ref[pl.ds(r0, tile), :].astype(jnp.float32) + attn            # residual 1

        h2 = layer_norm(xt, ln2_w_ref[0], ln2_b_ref[0]).astype(jnp.bfloat16)
        h1 = jnp.dot(h2, wfc_ref[...],
                     preferred_element_type=jnp.float32) + bfc_ref[0]
        # TODO(synk): run QuickGELU in bf16 on v6e/v7x (native bf16 VPU/EUP);
        #             kept f32 so the same kernel is exact-ish on v5e.
        h1 = h1 * jax.nn.sigmoid(1.702 * h1)                                 # QuickGELU
        y = jnp.dot(h1.astype(jnp.bfloat16), wpr_ref[...],
                    preferred_element_type=jnp.float32) + bpr_ref[0]

        out_ref[pl.ds(r0, tile), :] = (xt + y).astype(out_ref.dtype)         # residual 2

    if n_tiles == 1:
        attn_mlp_tile(0)
    else:
        lax.fori_loop(0, n_tiles, lambda t, c: (attn_mlp_tile(t), c)[1], 0)


# ----------------------------------------------------------------------------
# pallas_call builder
# ----------------------------------------------------------------------------
def _make_resblock_call(N, L_pad, E, n_head, dtype, tile, has_mask):
    n_tiles = L_pad // tile
    res = lambda: pl.BlockSpec(memory_space=pltpu.MemorySpace.VMEM)  # resident, untiled

    in_specs = [pl.BlockSpec((None, L_pad, E), lambda b: (b, 0, 0))]  # x (batch squeezed)
    if has_mask:
        in_specs.append(res())                                        # additive mask
    in_specs += [res()] * 12                                          # weights / biases / LN

    kernel = functools.partial(_resblock_kernel, n_head=n_head,
                               n_tiles=n_tiles, tile=tile, has_mask=has_mask)
    return pl.pallas_call(
        kernel,
        out_shape=jax.ShapeDtypeStruct((N, L_pad, E), dtype),
        grid=(N,),
        in_specs=in_specs,
        out_specs=pl.BlockSpec((None, L_pad, E), lambda b: (b, 0, 0)),
        scratch_shapes=[pltpu.VMEM((L_pad, 3 * E), jnp.bfloat16)],    # bf16 qkv scratch
        compiler_params=pltpu.CompilerParams(
            dimension_semantics=("parallel",),
            vmem_limit_bytes=_vmem_limit_bytes(
                L_pad, E, n_head, tile, has_mask, jnp.dtype(dtype).itemsize)),
    )


# ----------------------------------------------------------------------------
# Parameters: raw init, and one-time (hoisted) prep for the kernel.
# ----------------------------------------------------------------------------
def init_transformer_params(key, width, layers):
    params = []
    for _ in range(layers):
        keys = jax.random.split(key, 6)
        key = keys[0]
        E = width
        params.append(dict(
            ln1_w=jnp.ones((1, E), jnp.float32),
            ln1_b=jnp.zeros((1, E), jnp.float32),
            # PyTorch in_proj_weight is (3E, E); stored pre-transposed (E, 3E).
            wqkv=(0.02 * jax.random.normal(keys[1], (E, 3 * E))).astype(jnp.float32),
            bqkv=jnp.zeros((1, 3 * E), jnp.float32),
            wo=(0.02 * jax.random.normal(keys[2], (E, E))).astype(jnp.float32),
            bo=jnp.zeros((1, E), jnp.float32),
            ln2_w=jnp.ones((1, E), jnp.float32),
            ln2_b=jnp.zeros((1, E), jnp.float32),
            wfc=(0.02 * jax.random.normal(keys[3], (E, 4 * E))).astype(jnp.float32),
            bfc=(0.01 * jax.random.normal(keys[4], (1, 4 * E))).astype(jnp.float32),
            wpr=(0.02 * jax.random.normal(keys[5], (4 * E, E))).astype(jnp.float32),
            bpr=jnp.zeros((1, E), jnp.float32),
        ))
    return params


def prepare_transformer_params(params, n_head):
    """One-time prep (hoisted out of the forward): fold 1/sqrt(D) into the Q
    columns of the in-projection and cast matmul weights to bf16."""
    prepared = []
    for p in params:
        E = p["wo"].shape[0]
        D = E // n_head
        col = jnp.concatenate([jnp.full((E,), 1.0 / np.sqrt(D), jnp.float32),
                               jnp.ones((2 * E,), jnp.float32)])
        prepared.append(dict(
            ln1_w=p["ln1_w"], ln1_b=p["ln1_b"],
            wqkv=(p["wqkv"] * col[None, :]).astype(jnp.bfloat16),
            bqkv=(p["bqkv"] * col[None, :]).astype(jnp.float32),
            wo=p["wo"].astype(jnp.bfloat16), bo=p["bo"],
            ln2_w=p["ln2_w"], ln2_b=p["ln2_b"],
            wfc=p["wfc"].astype(jnp.bfloat16), bfc=p["bfc"],
            wpr=p["wpr"].astype(jnp.bfloat16), bpr=p["bpr"],
        ))
    return jax.tree_util.tree_map(jnp.asarray, prepared)


# ----------------------------------------------------------------------------
# Transformer forward (stack of residual attention blocks).
# ----------------------------------------------------------------------------
def transformer_forward(x_lne, prepared_params, n_head, attn_mask=None):
    """x_lne: (L, N, E) seq-first, like PyTorch. Returns (L, N, E)."""
    L, N, E = x_lne.shape
    L_pad, tile = _choose_tiling(L)
    pad = L_pad - L
    has_mask = (attn_mask is not None) or pad > 0

    mask = None
    if has_mask:
        mask = jnp.zeros((L_pad, L_pad), jnp.float32)
        if attn_mask is not None:
            # NOTE: rows that are fully masked (-inf everywhere) would NaN; the
            # standard causal / padding masks used with this block never do that.
            mask = mask.at[:L, :L].set(attn_mask.astype(jnp.float32))
        if pad > 0:
            mask = mask.at[:, L:].set(-1e30)   # padded key columns -> ~zero prob

    x = jnp.transpose(x_lne, (1, 0, 2))        # (N, L, E)
    if pad > 0:
        x = jnp.pad(x, ((0, 0), (0, pad), (0, 0)))

    call = _make_resblock_call(N, L_pad, E, n_head, x.dtype, tile, has_mask)
    for q in prepared_params:
        wargs = (q["ln1_w"], q["ln1_b"], q["wqkv"], q["bqkv"], q["wo"], q["bo"],
                 q["ln2_w"], q["ln2_b"], q["wfc"], q["bfc"], q["wpr"], q["bpr"])
        x = call(x, mask, *wargs) if has_mask else call(x, *wargs)

    if pad > 0:
        x = x[:, :L, :]
    return jnp.transpose(x, (1, 0, 2))         # back to (L, N, E)


# ----------------------------------------------------------------------------
# Pure-JAX reference (mirrors PyTorch semantics, f32) for a correctness check.
# ----------------------------------------------------------------------------
def _reference_forward(x_lne, params, n_head, attn_mask=None):
    L, N, E = x_lne.shape
    D = E // n_head
    mask = jnp.zeros((L, L), jnp.float32) if attn_mask is None else attn_mask
    x = jnp.transpose(x_lne, (1, 0, 2)).astype(jnp.float32)

    def ln(v, w, b):
        mu = v.mean(-1, keepdims=True)
        var = ((v - mu) ** 2).mean(-1, keepdims=True)
        return (v - mu) / jnp.sqrt(var + 1e-5) * w + b

    for p in params:
        h = ln(x, p["ln1_w"][0], p["ln1_b"][0])
        qkv = h @ p["wqkv"] + p["bqkv"][0]
        q, k, v = qkv[..., :E], qkv[..., E:2 * E], qkv[..., 2 * E:]
        q = q.reshape(N, L, n_head, D).transpose(0, 2, 1, 3)
        k = k.reshape(N, L, n_head, D).transpose(0, 2, 1, 3)
        v = v.reshape(N, L, n_head, D).transpose(0, 2, 1, 3)
        s = jnp.einsum("bhqd,bhkd->bhqk", q, k) / np.sqrt(D) + mask
        pbh = jax.nn.softmax(s, axis=-1)
        a = jnp.einsum("bhqk,bhkd->bhqd", pbh, v).transpose(0, 2, 1, 3).reshape(N, L, E)
        a = a @ p["wo"] + p["bo"][0]
        x = x + a
        h2 = ln(x, p["ln2_w"][0], p["ln2_b"][0])
        f = h2 @ p["wfc"] + p["bfc"][0]
        f = f * jax.nn.sigmoid(1.702 * f)
        x = x + (f @ p["wpr"] + p["bpr"][0])
    return jnp.transpose(x, (1, 0, 2))


if __name__ == "__main__":
    # Small shapes: seq L=8, batch N=2, width E=32, heads=4, layers=2.
    L, N, E, H, LAYERS = 8, 2, 32, 4, 2
    key = jax.random.PRNGKey(0)
    kx, kp = jax.random.split(key)
    x = jax.random.normal(kx, (L, N, E), dtype=jnp.float32)

    params = init_transformer_params(kp, E, LAYERS)
    prepared = prepare_transformer_params(params, H)   # hoisted, one-time weight prep

    fwd = jax.jit(functools.partial(transformer_forward, n_head=H))
    out = jax.block_until_ready(fwd(x, prepared))

    ref = jax.block_until_ready(_reference_forward(x, params, n_head=H))
    assert out.shape == (L, N, E)
    # bf16 MXU operands + approx reciprocal -> slightly relaxed tolerance vs f32 reference.
    np.testing.assert_allclose(np.asarray(out), np.asarray(ref), rtol=2e-2, atol=2e-2)
    print("KERNEL_OK")
</pallas_src>

<mosaic_0001>
module attributes {stable_mosaic.version = 11 : i64} {
  func.func @_resblock_kernel(%arg0: i32, %arg1: memref<1x8x32xf32, #tpu.memory_space<vmem>>, %arg2: memref<1x32xf32, #tpu.memory_space<vmem>>, %arg3: memref<1x32xf32, #tpu.memory_space<vmem>>, %arg4: memref<32x96xbf16, #tpu.memory_space<vmem>>, %arg5: memref<1x96xf32, #tpu.memory_space<vmem>>, %arg6: memref<32x32xbf16, #tpu.memory_space<vmem>>, %arg7: memref<1x32xf32, #tpu.memory_space<vmem>>, %arg8: memref<1x32xf32, #tpu.memory_space<vmem>>, %arg9: memref<1x32xf32, #tpu.memory_space<vmem>>, %arg10: memref<32x128xbf16, #tpu.memory_space<vmem>>, %arg11: memref<1x128xf32, #tpu.memory_space<vmem>>, %arg12: memref<128x32xbf16, #tpu.memory_space<vmem>>, %arg13: memref<1x32xf32, #tpu.memory_space<vmem>>, %arg14: memref<1x8x32xf32, #tpu.memory_space<vmem>>, %arg15: memref<8x96xbf16, #tpu.memory_space<vmem>>) attributes {dimension_semantics = [#tpu.dimension_semantics<parallel>], iteration_bounds = array<i64: 2>, scalar_prefetch = 0 : i64, scratch_operands = 1 : i64, tpu.core_type = #tpu.core_type<tc>, window_params = [{transform_indices = @transform_0, window_bounds = array<i64: 1, 8, 32>}, {pipeline_mode = #tpu.pipeline_mode<synchronous>, transform_indices = @transform_1, window_bounds = array<i64: 1, 32>}, {pipeline_mode = #tpu.pipeline_mode<synchronous>, transform_indices = @transform_2, window_bounds = array<i64: 1, 32>}, {pipeline_mode = #tpu.pipeline_mode<synchronous>, transform_indices = @transform_3, window_bounds = array<i64: 32, 96>}, {pipeline_mode = #tpu.pipeline_mode<synchronous>, transform_indices = @transform_4, window_bounds = array<i64: 1, 96>}, {pipeline_mode = #tpu.pipeline_mode<synchronous>, transform_indices = @transform_5, window_bounds = array<i64: 32, 32>}, {pipeline_mode = #tpu.pipeline_mode<synchronous>, transform_indices = @transform_6, window_bounds = array<i64: 1, 32>}, {pipeline_mode = #tpu.pipeline_mode<synchronous>, transform_indices = @transform_7, window_bounds = array<i64: 1, 32>}, {pipeline_mode = #tpu.pipeline_mode<synchronous>, transform_indices = @transform_8, window_bounds = array<i64: 1, 32>}, {pipeline_mode = #tpu.pipeline_mode<synchronous>, transform_indices = @transform_9, window_bounds = array<i64: 32, 128>}, {pipeline_mode = #tpu.pipeline_mode<synchronous>, transform_indices = @transform_10, window_bounds = array<i64: 1, 128>}, {pipeline_mode = #tpu.pipeline_mode<synchronous>, transform_indices = @transform_11, window_bounds = array<i64: 128, 32>}, {pipeline_mode = #tpu.pipeline_mode<synchronous>, transform_indices = @transform_12, window_bounds = array<i64: 1, 32>}, {transform_indices = @transform_13, window_bounds = array<i64: 1, 8, 32>}]} {
    %c0 = arith.constant 0 : index
    %c0_0 = arith.constant 0 : index
    %c0_1 = arith.constant 0 : index
    %0 = vector.load %arg1[%c0, %c0_0, %c0_1] : memref<1x8x32xf32, #tpu.memory_space<vmem>>, vector<1x8x32xf32>
    %1 = vector.shape_cast %0 : vector<1x8x32xf32> to vector<8x32xf32>
    %c0_2 = arith.constant 0 : index
    %c0_3 = arith.constant 0 : index
    %2 = vector.load %arg2[%c0_2, %c0_3] : memref<1x32xf32, #tpu.memory_space<vmem>>, vector<1x32xf32>
    %3 = vector.shape_cast %2 : vector<1x32xf32> to vector<32xf32>
    %c0_4 = arith.constant 0 : index
    %c0_5 = arith.constant 0 : index
    %4 = vector.load %arg3[%c0_4, %c0_5] : memref<1x32xf32, #tpu.memory_space<vmem>>, vector<1x32xf32>
    %5 = vector.shape_cast %4 : vector<1x32xf32> to vector<32xf32>
    %cst = arith.constant dense<0.000000e+00> : vector<8xf32>
    %6 = vector.multi_reduction <add>, %1, %cst [1] : vector<8x32xf32> to vector<8xf32>
    %7 = vector.shape_cast %6 : vector<8xf32> to vector<8x1xf32>
    %cst_6 = arith.constant 3.200000e+01 : f32
    %8 = vector.broadcast %cst_6 : f32 to vector<8x1xf32>
    %9 = arith.divf %7, %8 : vector<8x1xf32>
    %10 = vector.broadcast %9 : vector<8x1xf32> to vector<8x32xf32>
    %11 = arith.subf %1, %10 : vector<8x32xf32>
    %12 = arith.mulf %11, %11 : vector<8x32xf32>
    %cst_7 = arith.constant dense<0.000000e+00> : vector<8xf32>
    %13 = vector.multi_reduction <add>, %12, %cst_7 [1] : vector<8x32xf32> to vector<8xf32>
    %14 = vector.shape_cast %13 : vector<8xf32> to vector<8x1xf32>
    %cst_8 = arith.constant 3.200000e+01 : f32
    %15 = vector.broadcast %cst_8 : f32 to vector<8x1xf32>
    %16 = arith.divf %14, %15 : vector<8x1xf32>
    %cst_9 = arith.constant 9.99999974E-6 : f32
    %17 = vector.broadcast %cst_9 : f32 to vector<8x1xf32>
    %18 = arith.addf %16, %17 : vector<8x1xf32>
    %19 = math.rsqrt %18 : vector<8x1xf32>
    %20 = vector.broadcast %19 : vector<8x1xf32> to vector<8x32xf32>
    %21 = arith.mulf %11, %20 : vector<8x32xf32>
    %22 = vector.shape_cast %3 : vector<32xf32> to vector<1x32xf32>
    %23 = vector.broadcast %22 : vector<1x32xf32> to vector<8x32xf32>
    %24 = arith.mulf %21, %23 : vector<8x32xf32>
    %25 = vector.shape_cast %5 : vector<32xf32> to vector<1x32xf32>
    %26 = vector.broadcast %25 : vector<1x32xf32> to vector<8x32xf32>
    %27 = arith.addf %24, %26 : vector<8x32xf32>
    %28 = arith.truncf %27 : vector<8x32xf32> to vector<8x32xbf16>
    %c0_10 = arith.constant 0 : index
    %c0_11 = arith.constant 0 : index
    %29 = vector.load %arg4[%c0_10, %c0_11] : memref<32x96xbf16, #tpu.memory_space<vmem>>, vector<32x96xbf16>
    %cst_12 = arith.constant dense<0.000000e+00> : vector<8x96xf32>
    %30 = tpu.matmul %28, %29, %cst_12 {dimension_numbers = #tpu.dot_dimension_numbers<[1], [0], [0], [1], [0, 0, 1, 1], [], []>} : vector<8x32xbf16>, vector<32x96xbf16>, vector<8x96xf32> -> vector<8x96xf32>
    %c0_13 = arith.constant 0 : index
    %c0_14 = arith.constant 0 : index
    %31 = vector.load %arg5[%c0_13, %c0_14] : memref<1x96xf32, #tpu.memory_space<vmem>>, vector<1x96xf32>
    %32 = vector.shape_cast %31 : vector<1x96xf32> to vector<96xf32>
    %33 = vector.shape_cast %32 : vector<96xf32> to vector<1x96xf32>
    %34 = vector.broadcast %33 : vector<1x96xf32> to vector<8x96xf32>
    %35 = arith.addf %30, %34 : vector<8x96xf32>
    %36 = arith.truncf %35 : vector<8x96xf32> to vector<8x96xbf16>
    %c0_15 = arith.constant 0 : index
    %c0_16 = arith.constant 0 : index
    %37 = vector.load %arg15[%c0_15, %c0_16] : memref<8x96xbf16, #tpu.memory_space<vmem>>, vector<8x96xbf16>
    tpu.vector_store %arg15[%c0_15, %c0_16], %36 {strides = array<i32>} : memref<8x96xbf16, #tpu.memory_space<vmem>>, vector<8x96xbf16>,
    %c0_17 = arith.constant 0 : index
    %c32 = arith.constant 32 : index
    %38 = vector.load %arg15[%c0_17, %c32] : memref<8x96xbf16, #tpu.memory_space<vmem>>, vector<8x32xbf16>
    %39 = vector.shape_cast %38 : vector<8x32xbf16> to vector<8x4x8xbf16>
    %40 = tpu.transpose %39, [1, 0, 2] : vector<8x4x8xbf16> -> vector<4x8x8xbf16>
    %c0_18 = arith.constant 0 : index
    %c64 = arith.constant 64 : index
    %41 = vector.load %arg15[%c0_18, %c64] : memref<8x96xbf16, #tpu.memory_space<vmem>>, vector<8x32xbf16>
    %42 = vector.shape_cast %41 : vector<8x32xbf16> to vector<8x4x8xbf16>
    %43 = tpu.transpose %42, [1, 0, 2] : vector<8x4x8xbf16> -> vector<4x8x8xbf16>
    %c0_19 = arith.constant 0 : index
    %c0_20 = arith.constant 0 : index
    %44 = vector.load %arg15[%c0_19, %c0_20] : memref<8x96xbf16, #tpu.memory_space<vmem>>, vector<8x32xbf16>
    %45 = vector.shape_cast %44 : vector<8x32xbf16> to vector<8x4x8xbf16>
    %46 = tpu.transpose %45, [1, 0, 2] : vector<8x4x8xbf16> -> vector<4x8x8xbf16>
    %cst_21 = arith.constant dense<0.000000e+00> : vector<4x8x8xf32>
    %47 = tpu.matmul %46, %40, %cst_21 {dimension_numbers = #tpu.dot_dimension_numbers<[2], [2], [1], [1], [0, 0, 0, 1, 1, 1], [0], [0]>} : vector<4x8x8xbf16>, vector<4x8x8xbf16>, vector<4x8x8xf32> -> vector<4x8x8xf32>
    %cst_22 = arith.constant dense<0xFF800000> : vector<4x8xf32>
    %48 = vector.multi_reduction <maximumf>, %47, %cst_22 [2] : vector<4x8x8xf32> to vector<4x8xf32>
    %49 = vector.shape_cast %48 : vector<4x8xf32> to vector<4x8x1xf32>
    %50 = vector.broadcast %49 : vector<4x8x1xf32> to vector<4x8x8xf32>
    %51 = arith.subf %47, %50 : vector<4x8x8xf32>
    %52 = math.exp %51 : vector<4x8x8xf32>
    %cst_23 = arith.constant dense<0.000000e+00> : vector<4x8xf32>
    %53 = vector.multi_reduction <add>, %52, %cst_23 [2] : vector<4x8x8xf32> to vector<4x8xf32>
    %54 = vector.shape_cast %53 : vector<4x8xf32> to vector<4x8x1xf32>
    %55 = tpu.reciprocal %54 {approx = true} : vector<4x8x1xf32> -> vector<4x8x1xf32>
    %56 = vector.broadcast %55 : vector<4x8x1xf32> to vector<4x8x8xf32>
    %57 = arith.mulf %52, %56 : vector<4x8x8xf32>
    %58 = arith.truncf %57 : vector<4x8x8xf32> to vector<4x8x8xbf16>
    %cst_24 = arith.constant dense<0.000000e+00> : vector<4x8x8xf32>
    %59 = tpu.matmul %58, %43, %cst_24 {dimension_numbers = #tpu.dot_dimension_numbers<[2], [1], [1], [2], [0, 0, 0, 1, 1, 2], [0], [0]>} : vector<4x8x8xbf16>, vector<4x8x8xbf16>, vector<4x8x8xf32> -> vector<4x8x8xf32>
    %60 = arith.truncf %59 : vector<4x8x8xf32> to vector<4x8x8xbf16>
    %61 = tpu.transpose %60, [1, 0, 2] : vector<4x8x8xbf16> -> vector<8x4x8xbf16>
    %62 = vector.shape_cast %61 : vector<8x4x8xbf16> to vector<8x32xbf16>
    %c0_25 = arith.constant 0 : index
    %c0_26 = arith.constant 0 : index
    %63 = vector.load %arg6[%c0_25, %c0_26] : memref<32x32xbf16, #tpu.memory_space<vmem>>, vector<32x32xbf16>
    %cst_27 = arith.constant dense<0.000000e+00> : vector<8x32xf32>
    %64 = tpu.matmul %62, %63, %cst_27 {dimension_numbers = #tpu.dot_dimension_numbers<[1], [0], [0], [1], [0, 0, 1, 1], [], []>} : vector<8x32xbf16>, vector<32x32xbf16>, vector<8x32xf32> -> vector<8x32xf32>
    %c0_28 = arith.constant 0 : index
    %c0_29 = arith.constant 0 : index
    %65 = vector.load %arg7[%c0_28, %c0_29] : memref<1x32xf32, #tpu.memory_space<vmem>>, vector<1x32xf32>
    %66 = vector.shape_cast %65 : vector<1x32xf32> to vector<32xf32>
    %67 = vector.shape_cast %66 : vector<32xf32> to vector<1x32xf32>
    %68 = vector.broadcast %67 : vector<1x32xf32> to vector<8x32xf32>
    %69 = arith.addf %64, %68 : vector<8x32xf32>
    %c0_30 = arith.constant 0 : index
    %c0_31 = arith.constant 0 : index
    %c0_32 = arith.constant 0 : index
    %70 = vector.load %arg1[%c0_30, %c0_31, %c0_32] : memref<1x8x32xf32, #tpu.memory_space<vmem>>, vector<1x8x32xf32>
    %71 = vector.shape_cast %70 : vector<1x8x32xf32> to vector<8x32xf32>
    %72 = arith.addf %71, %69 : vector<8x32xf32>
    %c0_33 = arith.constant 0 : index
    %c0_34 = arith.constant 0 : index
    %73 = vector.load %arg8[%c0_33, %c0_34] : memref<1x32xf32, #tpu.memory_space<vmem>>, vector<1x32xf32>
    %74 = vector.shape_cast %73 : vector<1x32xf32> to vector<32xf32>
    %c0_35 = arith.constant 0 : index
    %c0_36 = arith.constant 0 : index
    %75 = vector.load %arg9[%c0_35, %c0_36] : memref<1x32xf32, #tpu.memory_space<vmem>>, vector<1x32xf32>
    %76 = vector.shape_cast %75 : vector<1x32xf32> to vector<32xf32>
    %cst_37 = arith.constant dense<0.000000e+00> : vector<8xf32>
    %77 = vector.multi_reduction <add>, %72, %cst_37 [1] : vector<8x32xf32> to vector<8xf32>
    %78 = vector.shape_cast %77 : vector<8xf32> to vector<8x1xf32>
    %cst_38 = arith.constant 3.200000e+01 : f32
    %79 = vector.broadcast %cst_38 : f32 to vector<8x1xf32>
    %80 = arith.divf %78, %79 : vector<8x1xf32>
    %81 = vector.broadcast %80 : vector<8x1xf32> to vector<8x32xf32>
    %82 = arith.subf %72, %81 : vector<8x32xf32>
    %83 = arith.mulf %82, %82 : vector<8x32xf32>
    %cst_39 = arith.constant dense<0.000000e+00> : vector<8xf32>
    %84 = vector.multi_reduction <add>, %83, %cst_39 [1] : vector<8x32xf32> to vector<8xf32>
    %85 = vector.shape_cast %84 : vector<8xf32> to vector<8x1xf32>
    %cst_40 = arith.constant 3.200000e+01 : f32
    %86 = vector.broadcast %cst_40 : f32 to vector<8x1xf32>
    %87 = arith.divf %85, %86 : vector<8x1xf32>
    %cst_41 = arith.constant 9.99999974E-6 : f32
    %88 = vector.broadcast %cst_41 : f32 to vector<8x1xf32>
    %89 = arith.addf %87, %88 : vector<8x1xf32>
    %90 = math.rsqrt %89 : vector<8x1xf32>
    %91 = vector.broadcast %90 : vector<8x1xf32> to vector<8x32xf32>
    %92 = arith.mulf %82, %91 : vector<8x32xf32>
    %93 = vector.shape_cast %74 : vector<32xf32> to vector<1x32xf32>
    %94 = vector.broadcast %93 : vector<1x32xf32> to vector<8x32xf32>
    %95 = arith.mulf %92, %94 : vector<8x32xf32>
    %96 = vector.shape_cast %76 : vector<32xf32> to vector<1x32xf32>
    %97 = vector.broadcast %96 : vector<1x32xf32> to vector<8x32xf32>
    %98 = arith.addf %95, %97 : vector<8x32xf32>
    %99 = arith.truncf %98 : vector<8x32xf32> to vector<8x32xbf16>
    %c0_42 = arith.constant 0 : index
    %c0_43 = arith.constant 0 : index
    %100 = vector.load %arg10[%c0_42, %c0_43] : memref<32x128xbf16, #tpu.memory_space<vmem>>, vector<32x128xbf16>
    %cst_44 = arith.constant dense<0.000000e+00> : vector<8x128xf32>
    %101 = tpu.matmul %99, %100, %cst_44 {dimension_numbers = #tpu.dot_dimension_numbers<[1], [0], [0], [1], [0, 0, 1, 1], [], []>} : vector<8x32xbf16>, vector<32x128xbf16>, vector<8x128xf32> -> vector<8x128xf32>
    %c0_45 = arith.constant 0 : index
    %c0_46 = arith.constant 0 : index
    %102 = vector.load %arg11[%c0_45, %c0_46] : memref<1x128xf32, #tpu.memory_space<vmem>>, vector<1x128xf32>
    %103 = vector.shape_cast %102 : vector<1x128xf32> to vector<128xf32>
    %104 = vector.shape_cast %103 : vector<128xf32> to vector<1x128xf32>
    %105 = vector.broadcast %104 : vector<1x128xf32> to vector<8x128xf32>
    %106 = arith.addf %101, %105 : vector<8x128xf32>
    %cst_47 = arith.constant 1.702000e+00 : f32
    %107 = vector.broadcast %cst_47 : f32 to vector<8x128xf32>
    %108 = arith.mulf %107, %106 : vector<8x128xf32>
    %109 = arith.negf %108 : vector<8x128xf32>
    %110 = math.exp %109 : vector<8x128xf32>
    %cst_48 = arith.constant 1.000000e+00 : f32
    %111 = vector.broadcast %cst_48 : f32 to vector<8x128xf32>
    %112 = arith.addf %111, %110 : vector<8x128xf32>
    %113 = arith.divf %111, %112 : vector<8x128xf32>
    %114 = arith.mulf %106, %113 : vector<8x128xf32>
    %115 = arith.truncf %114 : vector<8x128xf32> to vector<8x128xbf16>
    %c0_49 = arith.constant 0 : index
    %c0_50 = arith.constant 0 : index
    %116 = vector.load %arg12[%c0_49, %c0_50] : memref<128x32xbf16, #tpu.memory_space<vmem>>, vector<128x32xbf16>
    %cst_51 = arith.constant dense<0.000000e+00> : vector<8x32xf32>
    %117 = tpu.matmul %115, %116, %cst_51 {dimension_numbers = #tpu.dot_dimension_numbers<[1], [0], [0], [1], [0, 0, 1, 1], [], []>} : vector<8x128xbf16>, vector<128x32xbf16>, vector<8x32xf32> -> vector<8x32xf32>
    %c0_52 = arith.constant 0 : index
    %c0_53 = arith.constant 0 : index
    %118 = vector.load %arg13[%c0_52, %c0_53] : memref<1x32xf32, #tpu.memory_space<vmem>>, vector<1x32xf32>
    %119 = vector.shape_cast %118 : vector<1x32xf32> to vector<32xf32>
    %120 = vector.shape_cast %119 : vector<32xf32> to vector<1x32xf32>
    %121 = vector.broadcast %120 : vector<1x32xf32> to vector<8x32xf32>
    %122 = arith.addf %117, %121 : vector<8x32xf32>
    %123 = arith.addf %72, %122 : vector<8x32xf32>
    %c0_54 = arith.constant 0 : index
    %c0_55 = arith.constant 0 : index
    %c0_56 = arith.constant 0 : index
    %124 = vector.load %arg14[%c0_54, %c0_55, %c0_56] : memref<1x8x32xf32, #tpu.memory_space<vmem>>, vector<1x8x32xf32>
    %125 = vector.shape_cast %124 : vector<1x8x32xf32> to vector<8x32xf32>
    %126 = vector.shape_cast %123 : vector<8x32xf32> to vector<1x8x32xf32>
    tpu.vector_store %arg14[%c0_54, %c0_55, %c0_56], %126 {strides = array<i32>} : memref<1x8x32xf32, #tpu.memory_space<vmem>>, vector<1x8x32xf32>,
    return
  }
  func.func @transform_0(%arg0: i32) -> (i32, i32, i32) {
    %c0_i32 = arith.constant 0 : i32
    %c0_i32_0 = arith.constant 0 : i32
    %c0_i32_1 = arith.constant 0 : i32
    return %arg0, %c0_i32, %c0_i32_0 : i32, i32, i32
  }
  func.func @transform_1(%arg0: i32) -> (i32, i32) {
    %c0_i32 = arith.constant 0 : i32
    %c0_i32_0 = arith.constant 0 : i32
    %c0_i32_1 = arith.constant 0 : i32
    return %c0_i32, %c0_i32_0 : i32, i32
  }
  func.func @transform_2(%arg0: i32) -> (i32, i32) {
    %c0_i32 = arith.constant 0 : i32
    %c0_i32_0 = arith.constant 0 : i32
    %c0_i32_1 = arith.constant 0 : i32
    return %c0_i32, %c0_i32_0 : i32, i32
  }
  func.func @transform_3(%arg0: i32) -> (i32, i32) {
    %c0_i32 = arith.constant 0 : i32
    %c0_i32_0 = arith.constant 0 : i32
    %c0_i32_1 = arith.constant 0 : i32
    return %c0_i32, %c0_i32_0 : i32, i32
  }
  func.func @transform_4(%arg0: i32) -> (i32, i32) {
    %c0_i32 = arith.constant 0 : i32
    %c0_i32_0 = arith.constant 0 : i32
    %c0_i32_1 = arith.constant 0 : i32
    return %c0_i32, %c0_i32_0 : i32, i32
  }
  func.func @transform_5(%arg0: i32) -> (i32, i32) {
    %c0_i32 = arith.constant 0 : i32
    %c0_i32_0 = arith.constant 0 : i32
    %c0_i32_1 = arith.constant 0 : i32
    return %c0_i32, %c0_i32_0 : i32, i32
  }
  func.func @transform_6(%arg0: i32) -> (i32, i32) {
    %c0_i32 = arith.constant 0 : i32
    %c0_i32_0 = arith.constant 0 : i32
    %c0_i32_1 = arith.constant 0 : i32
    return %c0_i32, %c0_i32_0 : i32, i32
  }
  func.func @transform_7(%arg0: i32) -> (i32, i32) {
    %c0_i32 = arith.constant 0 : i32
    %c0_i32_0 = arith.constant 0 : i32
    %c0_i32_1 = arith.constant 0 : i32
    return %c0_i32, %c0_i32_0 : i32, i32
  }
  func.func @transform_8(%arg0: i32) -> (i32, i32) {
    %c0_i32 = arith.constant 0 : i32
    %c0_i32_0 = arith.constant 0 : i32
    %c0_i32_1 = arith.constant 0 : i32
    return %c0_i32, %c0_i32_0 : i32, i32
  }
  func.func @transform_9(%arg0: i32) -> (i32, i32) {
    %c0_i32 = arith.constant 0 : i32
    %c0_i32_0 = arith.constant 0 : i32
    %c0_i32_1 = arith.constant 0 : i32
    return %c0_i32, %c0_i32_0 : i32, i32
  }
  func.func @transform_10(%arg0: i32) -> (i32, i32) {
    %c0_i32 = arith.constant 0 : i32
    %c0_i32_0 = arith.constant 0 : i32
    %c0_i32_1 = arith.constant 0 : i32
    return %c0_i32, %c0_i32_0 : i32, i32
  }
  func.func @transform_11(%arg0: i32) -> (i32, i32) {
    %c0_i32 = arith.constant 0 : i32
    %c0_i32_0 = arith.constant 0 : i32
    %c0_i32_1 = arith.constant 0 : i32
    return %c0_i32, %c0_i32_0 : i32, i32
  }
  func.func @transform_12(%arg0: i32) -> (i32, i32) {
    %c0_i32 = arith.constant 0 : i32
    %c0_i32_0 = arith.constant 0 : i32
    %c0_i32_1 = arith.constant 0 : i32
    return %c0_i32, %c0_i32_0 : i32, i32
  }
  func.func @transform_13(%arg0: i32) -> (i32, i32, i32) {
    %c0_i32 = arith.constant 0 : i32
    %c0_i32_0 = arith.constant 0 : i32
    %c0_i32_1 = arith.constant 0 : i32
    return %arg0, %c0_i32, %c0_i32_0 : i32, i32, i32
  }
}

</mosaic_0001>

<llo_original>
// kernel: transformer_forward.2
$region0: #{transformer_forward.2}
  #allocation0 [shape = 'u32[]', space=smem, size = 0x4, offset = 0x4, fixed_abs, tag = 'smem constant byte address 0x4 - core index']
  #allocation1 [shape = 'u32[144,128]{1,0:T(1,128)}', space=vmem, size = 0x12000, scoped, tag = 'internal scratch']
  #allocation2 [shape = 'bf16[8,96]{1,0:T(8,128)(2,1)}', space=vmem, size = 0x800, scoped, tag = 'scratch operand']
  %s0 = inlined_call_operand.vmem [shape: f32[2,8,32], index: 0, kind: input, shape index: {}]
  %s1 = inlined_call_operand.vmem [shape: f32[1,32], index: 1, kind: input, shape index: {}]
  %s2 = inlined_call_operand.vmem [shape: f32[1,32], index: 2, kind: input, shape index: {}]
  %s3 = inlined_call_operand.vmem [shape: bf16[32,96], index: 3, kind: input, shape index: {}]
  %s4 = inlined_call_operand.vmem [shape: f32[1,96], index: 4, kind: input, shape index: {}]
  %s5 = inlined_call_operand.vmem [shape: bf16[32,32], index: 5, kind: input, shape index: {}]
  %s6 = inlined_call_operand.vmem [shape: f32[1,32], index: 6, kind: input, shape index: {}]
  %s7 = inlined_call_operand.vmem [shape: f32[1,32], index: 7, kind: input, shape index: {}]
  %s8 = inlined_call_operand.vmem [shape: f32[1,32], index: 8, kind: input, shape index: {}]
  %s9 = inlined_call_operand.vmem [shape: bf16[32,128], index: 9, kind: input, shape index: {}]
  %s10 = inlined_call_operand.vmem [shape: f32[1,128], index: 10, kind: input, shape index: {}]
  %s11 = inlined_call_operand.vmem [shape: bf16[128,32], index: 11, kind: input, shape index: {}]
  %s12 = inlined_call_operand.vmem [shape: f32[1,32], index: 12, kind: input, shape index: {}]
  %s13 = inlined_call_operand.vmem [shape: f32[2,8,32], index: 13, kind: output, shape index: {}]
  %s14 = sld [smem:[#allocation0]]
  $region85: #{transformer_forward.2} parent=0
    _
  %s16 = ssub.s32 1, %s14
  %s17 = scalar_select 0, %s16, %s14
  loop: start=0, step=1, limit=4
  $region2: #{transformer_forward.2} parent=0 // loop_pre_header
    _
  $region3: #{transformer_forward.2} parent=0 // loop_header
    %s19 = sphi 0, %s23
    %p20 = scmp.ge.s32.totalorder %s19, 4
    %s29 = sphi 0, %s31
    %s32 = sphi 0, %s29
    %s33 = sphi 0, %s32
    %s49 = sphi 0, %s33
    %s53 = sphi 0, %s53
    %s55 = sphi 0, %s53
    %s56 = sphi 0, %s55
    %s70 = sphi 0, %s56
    %s74 = sphi 0, %s74
    %s76 = sphi 0, %s74
    %s77 = sphi 0, %s76
    %s91 = sphi 0, %s77
    %s95 = sphi 0, %s95
    %s97 = sphi 0, %s95
    %s98 = sphi 0, %s97
    %s112 = sphi 0, %s98
    %s116 = sphi 0, %s116
    %s118 = sphi 0, %s116
    %s119 = sphi 0, %s118
    %s133 = sphi 0, %s119
    %s137 = sphi 0, %s137
    %s139 = sphi 0, %s137
    %s140 = sphi 0, %s139
    %s154 = sphi 0, %s140
    %s158 = sphi 0, %s158
    %s160 = sphi 0, %s158
    %s161 = sphi 0, %s160
    %s175 = sphi 0, %s161
    %s179 = sphi 0, %s179
    %s181 = sphi 0, %s179
    %s182 = sphi 0, %s181
    %s196 = sphi 0, %s182
    %s200 = sphi 0, %s200
    %s202 = sphi 0, %s200
    %s203 = sphi 0, %s202
    %s217 = sphi 0, %s203
    %s221 = sphi 0, %s221
    %s223 = sphi 0, %s221
    %s224 = sphi 0, %s223
    %s238 = sphi 0, %s224
    %s242 = sphi 0, %s242
    %s244 = sphi 0, %s242
    %s245 = sphi 0, %s244
    %s259 = sphi 0, %s245
    %s263 = sphi 0, %s263
    %s265 = sphi 0, %s263
    %s266 = sphi 0, %s265
    %s280 = sphi 0, %s266
    %s284 = sphi 0, %s284
    %s286 = sphi 0, %s284
    %s287 = sphi 0, %s286
    %s301 = sphi 0, %s287
    %s307 = sphi 0, %s309
    %s310 = sphi 0, %s307
    %s311 = sphi 0, %s310
    %s327 = sphi 0, %s311
  $region4: #{transformer_forward.2} parent=0 // loop_header_branch
    %22 = sbr.rel (%p20) target = $region8
  $region5: #{transformer_forward.2} parent=0 // loop_body
    %s24 = ssub.s32 %s19, 1
    %s25 = ssub.s32 %s19, 2
    %s26 = sadd.s32 %s19, 1
    %s27 = ssub.s32 %s19, %s26
    %p28 = scmp.eq.s32.totalorder %s27, 0
    %s30 = sadd.s32 %s29, 1
    %s31 = scalar_select %p28, %s29, %s30
    %p34 = pneg %p28
    %p35 = scmp.eq.s32.totalorder %s19, 1
    %p36 = por %p34, %p35
    %p37 = scmp.ne.s32.totalorder %s29, %s32
    %p38 = scmp.eq.s32.totalorder %s19, 0
    %p39 = por %p37, %p38
    %p40 = scmp.ne.s32.totalorder %s29, %s32
    %p41 = scmp.eq.s32.totalorder %s24, 1
    %p42 = por %p40, %p41
    %p43 = scmp.ne.s32.totalorder %s32, %s33
    %p44 = scmp.eq.s32.totalorder %s24, 0
    %p45 = por %p43, %p44
    %p46 = scmp.ne.s32.totalorder %s32, %s33
    %p47 = scmp.eq.s32.totalorder %s25, 1
    %p48 = por %p46, %p47
    %p50 = scmp.ne.s32.totalorder %s33, %s49
    %p51 = scmp.eq.s32.totalorder %s25, 0
    %p52 = por %p50, %p51
    %s54 = sadd.s32 %s53, 1
    %p57 = scmp.eq.s32.totalorder %s19, 1
    %p58 = scmp.ne.s32.totalorder %s53, %s55
    %p59 = scmp.eq.s32.totalorder %s19, 0
    %p60 = por %p58, %p59
    %p61 = scmp.ne.s32.totalorder %s53, %s55
    %p62 = scmp.eq.s32.totalorder %s24, 1
    %p63 = por %p61, %p62
    %p64 = scmp.ne.s32.totalorder %s55, %s56
    %p65 = scmp.eq.s32.totalorder %s24, 0
    %p66 = por %p64, %p65
    %p67 = scmp.ne.s32.totalorder %s55, %s56
    %p68 = scmp.eq.s32.totalorder %s25, 1
    %p69 = por %p67, %p68
    %p71 = scmp.ne.s32.totalorder %s56, %s70
    %p72 = scmp.eq.s32.totalorder %s25, 0
    %p73 = por %p71, %p72
    %s75 = sadd.s32 %s74, 1
    %p78 = scmp.eq.s32.totalorder %s19, 1
    %p79 = scmp.ne.s32.totalorder %s74, %s76
    %p80 = scmp.eq.s32.totalorder %s19, 0
    %p81 = por %p79, %p80
    %p82 = scmp.ne.s32.totalorder %s74, %s76
    %p83 = scmp.eq.s32.totalorder %s24, 1
    %p84 = por %p82, %p83
    %p85 = scmp.ne.s32.totalorder %s76, %s77
    %p86 = scmp.eq.s32.totalorder %s24, 0
    %p87 = por %p85, %p86
    %p88 = scmp.ne.s32.totalorder %s76, %s77
    %p89 = scmp.eq.s32.totalorder %s25, 1
    %p90 = por %p88, %p89
    %p92 = scmp.ne.s32.totalorder %s77, %s91
    %p93 = scmp.eq.s32.totalorder %s25, 0
    %p94 = por %p92, %p93
    %s96 = sadd.s32 %s95, 1
    %p99 = scmp.eq.s32.totalorder %s19, 1
    %p100 = scmp.ne.s32.totalorder %s95, %s97
    %p101 = scmp.eq.s32.totalorder %s19, 0
    %p102 = por %p100, %p101
    %p103 = scmp.ne.s32.totalorder %s95, %s97
    %p104 = scmp.eq.s32.totalorder %s24, 1
    %p105 = por %p103, %p104
    %p106 = scmp.ne.s32.totalorder %s97, %s98
    %p107 = scmp.eq.s32.totalorder %s24, 0
    %p108 = por %p106, %p107
    %p109 = scmp.ne.s32.totalorder %s97, %s98
    %p110 = scmp.eq.s32.totalorder %s25, 1
    %p111 = por %p109, %p110
    %p113 = scmp.ne.s32.totalorder %s98, %s112
    %p114 = scmp.eq.s32.totalorder %s25, 0
    %p115 = por %p113, %p114
    %s117 = sadd.s32 %s116, 1
    %p120 = scmp.eq.s32.totalorder %s19, 1
    %p121 = scmp.ne.s32.totalorder %s116, %s118
    %p122 = scmp.eq.s32.totalorder %s19, 0
    %p123 = por %p121, %p122
    %p124 = scmp.ne.s32.totalorder %s116, %s118
    %p125 = scmp.eq.s32.totalorder %s24, 1
    %p126 = por %p124, %p125
    %p127 = scmp.ne.s32.totalorder %s118, %s119
    %p128 = scmp.eq.s32.totalorder %s24, 0
    %p129 = por %p127, %p128
    %p130 = scmp.ne.s32.totalorder %s118, %s119
    %p131 = scmp.eq.s32.totalorder %s25, 1
    %p132 = por %p130, %p131
    %p134 = scmp.ne.s32.totalorder %s119, %s133
    %p135 = scmp.eq.s32.totalorder %s25, 0
    %p136 = por %p134, %p135
    %s138 = sadd.s32 %s137, 1
    %p141 = scmp.eq.s32.totalorder %s19, 1
    %p142 = scmp.ne.s32.totalorder %s137, %s139
    %p143 = scmp.eq.s32.totalorder %s19, 0
    %p144 = por %p142, %p143
    %p145 = scmp.ne.s32.totalorder %s137, %s139
    %p146 = scmp.eq.s32.totalorder %s24, 1
    %p147 = por %p145, %p146
    %p148 = scmp.ne.s32.totalorder %s139, %s140
    %p149 = scmp.eq.s32.totalorder %s24, 0
    %p150 = por %p148, %p149
    %p151 = scmp.ne.s32.totalorder %s139, %s140
    %p152 = scmp.eq.s32.totalorder %s25, 1
    %p153 = por %p151, %p152
    %p155 = scmp.ne.s32.totalorder %s140, %s154
    %p156 = scmp.eq.s32.totalorder %s25, 0
    %p157 = por %p155, %p156
    %s159 = sadd.s32 %s158, 1
    %p162 = scmp.eq.s32.totalorder %s19, 1
    %p163 = scmp.ne.s32.totalorder %s158, %s160
    %p164 = scmp.eq.s32.totalorder %s19, 0
    %p165 = por %p163, %p164
    %p166 = scmp.ne.s32.totalorder %s158, %s160
    %p167 = scmp.eq.s32.totalorder %s24, 1
    %p168 = por %p166, %p167
    %p169 = scmp.ne.s32.totalorder %s160, %s161
    %p170 = scmp.eq.s32.totalorder %s24, 0
    %p171 = por %p169, %p170
    %p172 = scmp.ne.s32.totalorder %s160, %s161
    %p173 = scmp.eq.s32.totalorder %s25, 1
    %p174 = por %p172, %p173
    %p176 = scmp.ne.s32.totalorder %s161, %s175
    %p177 = scmp.eq.s32.totalorder %s25, 0
    %p178 = por %p176, %p177
    %s180 = sadd.s32 %s179, 1
    %p183 = scmp.eq.s32.totalorder %s19, 1
    %p184 = scmp.ne.s32.totalorder %s179, %s181
    %p185 = scmp.eq.s32.totalorder %s19, 0
    %p186 = por %p184, %p185
    %p187 = scmp.ne.s32.totalorder %s179, %s181
    %p188 = scmp.eq.s32.totalorder %s24, 1
    %p189 = por %p187, %p188
    %p190 = scmp.ne.s32.totalorder %s181, %s182
    %p191 = scmp.eq.s32.totalorder %s24, 0
    %p192 = por %p190, %p191
    %p193 = scmp.ne.s32.totalorder %s181, %s182
    %p194 = scmp.eq.s32.totalorder %s25, 1
    %p195 = por %p193, %p194
    %p197 = scmp.ne.s32.totalorder %s182, %s196
    %p198 = scmp.eq.s32.totalorder %s25, 0
    %p199 = por %p197, %p198
    %s201 = sadd.s32 %s200, 1
    %p204 = scmp.eq.s32.totalorder %s19, 1
    %p205 = scmp.ne.s32.totalorder %s200, %s202
    %p206 = scmp.eq.s32.totalorder %s19, 0
    %p207 = por %p205, %p206
    %p208 = scmp.ne.s32.totalorder %s200, %s202
    %p209 = scmp.eq.s32.totalorder %s24, 1
    %p210 = por %p208, %p209
    %p211 = scmp.ne.s32.totalorder %s202, %s203
    %p212 = scmp.eq.s32.totalorder %s24, 0
    %p213 = por %p211, %p212
    %p214 = scmp.ne.s32.totalorder %s202, %s203
    %p215 = scmp.eq.s32.totalorder %s25, 1
    %p216 = por %p214, %p215
    %p218 = scmp.ne.s32.totalorder %s203, %s217
    %p219 = scmp.eq.s32.totalorder %s25, 0
    %p220 = por %p218, %p219
    %s222 = sadd.s32 %s221, 1
    %p225 = scmp.eq.s32.totalorder %s19, 1
    %p226 = scmp.ne.s32.totalorder %s221, %s223
    %p227 = scmp.eq.s32.totalorder %s19, 0
    %p228 = por %p226, %p227
    %p229 = scmp.ne.s32.totalorder %s221, %s223
    %p230 = scmp.eq.s32.totalorder %s24, 1
    %p231 = por %p229, %p230
    %p232 = scmp.ne.s32.totalorder %s223, %s224
    %p233 = scmp.eq.s32.totalorder %s24, 0
    %p234 = por %p232, %p233
    %p235 = scmp.ne.s32.totalorder %s223, %s224
    %p236 = scmp.eq.s32.totalorder %s25, 1
    %p237 = por %p235, %p236
    %p239 = scmp.ne.s32.totalorder %s224, %s238
    %p240 = scmp.eq.s32.totalorder %s25, 0
    %p241 = por %p239, %p240
    %s243 = sadd.s32 %s242, 1
    %p246 = scmp.eq.s32.totalorder %s19, 1
    %p247 = scmp.ne.s32.totalorder %s242, %s244
    %p248 = scmp.eq.s32.totalorder %s19, 0
    %p249 = por %p247, %p248
    %p250 = scmp.ne.s32.totalorder %s242, %s244
    %p251 = scmp.eq.s32.totalorder %s24, 1
    %p252 = por %p250, %p251
    %p253 = scmp.ne.s32.totalorder %s244, %s245
    %p254 = scmp.eq.s32.totalorder %s24, 0
    %p255 = por %p253, %p254
    %p256 = scmp.ne.s32.totalorder %s244, %s245
    %p257 = scmp.eq.s32.totalorder %s25, 1
    %p258 = por %p256, %p257
    %p260 = scmp.ne.s32.totalorder %s245, %s259
    %p261 = scmp.eq.s32.totalorder %s25, 0
    %p262 = por %p260, %p261
    %s264 = sadd.s32 %s263, 1
    %p267 = scmp.eq.s32.totalorder %s19, 1
    %p268 = scmp.ne.s32.totalorder %s263, %s265
    %p269 = scmp.eq.s32.totalorder %s19, 0
    %p270 = por %p268, %p269
    %p271 = scmp.ne.s32.totalorder %s263, %s265
    %p272 = scmp.eq.s32.totalorder %s24, 1
    %p273 = por %p271, %p272
    %p274 = scmp.ne.s32.totalorder %s265, %s266
    %p275 = scmp.eq.s32.totalorder %s24, 0
    %p276 = por %p274, %p275
    %p277 = scmp.ne.s32.totalorder %s265, %s266
    %p278 = scmp.eq.s32.totalorder %s25, 1
    %p279 = por %p277, %p278
    %p281 = scmp.ne.s32.totalorder %s266, %s280
    %p282 = scmp.eq.s32.totalorder %s25, 0
    %p283 = por %p281, %p282
    %s285 = sadd.s32 %s284, 1
    %p288 = scmp.eq.s32.totalorder %s19, 1
    %p289 = scmp.ne.s32.totalorder %s284, %s286
    %p290 = scmp.eq.s32.totalorder %s19, 0
    %p291 = por %p289, %p290
    %p292 = scmp.ne.s32.totalorder %s284, %s286
    %p293 = scmp.eq.s32.totalorder %s24, 1
    %p294 = por %p292, %p293
    %p295 = scmp.ne.s32.totalorder %s286, %s287
    %p296 = scmp.eq.s32.totalorder %s24, 0
    %p297 = por %p295, %p296
    %p298 = scmp.ne.s32.totalorder %s286, %s287
    %p299 = scmp.eq.s32.totalorder %s25, 1
    %p300 = por %p298, %p299
    %p302 = scmp.ne.s32.totalorder %s287, %s301
    %p303 = scmp.eq.s32.totalorder %s25, 0
    %p304 = por %p302, %p303
    %s305 = ssub.s32 %s19, %s26
    %p306 = scmp.eq.s32.totalorder %s305, 0
    %s308 = sadd.s32 %s307, 1
    %s309 = scalar_select %p306, %s307, %s308
    %p312 = pneg %p306
    %p313 = scmp.eq.s32.totalorder %s19, 1
    %p314 = por %p312, %p313
    %p315 = scmp.ne.s32.totalorder %s307, %s310
    %p316 = scmp.eq.s32.totalorder %s19, 0
    %p317 = por %p315, %p316
    %p318 = scmp.ne.s32.totalorder %s307, %s310
    %p319 = scmp.eq.s32.totalorder %s24, 1
    %p320 = por %p318, %p319
    %p321 = scmp.ne.s32.totalorder %s310, %s311
    %p322 = scmp.eq.s32.totalorder %s24, 0
    %p323 = por %p321, %p322
    %p324 = scmp.ne.s32.totalorder %s310, %s311
    %p325 = scmp.eq.s32.totalorder %s25, 1
    %p326 = por %p324, %p325
    %p328 = scmp.ne.s32.totalorder %s311, %s327
    %p329 = scmp.eq.s32.totalorder %s25, 0
    %p330 = por %p328, %p329
    %p331 = scmp.le.s32.totalorder 1, %s19
    %p332 = scmp.lt.s32.totalorder %s19, 3
    %p333 = pnand %p331, %p332
    %p334 = pneg %p333
    // Predicated region
    $region9: #{transformer_forward.2} parent=5 // pred_check
      _
    $region10: #{transformer_forward.2} parent=5 // pred_check_branch
      %336 = sbr.rel (%p333) target = $region12
    $region11: #{transformer_forward.2} parent=5 // pred_region
      %s337 = ssub.s32 %s19, 1
      // Predicated region
      $region13: #{transformer_forward.2} parent=11 // pred_check
        %p338 = pneg %p66
      $region14: #{transformer_forward.2} parent=11 // pred_check_branch
        %340 = sbr.rel (%p338) target = $region16
      $region15: #{transformer_forward.2} parent=11 // pred_region
        _
      $region16: #{transformer_forward.2} parent=11 // pred_fallthru
        _
      // Predicated region
      $region17: #{transformer_forward.2} parent=11 // pred_check
        %p341 = pneg %p87
      $region18: #{transformer_forward.2} parent=11 // pred_check_branch
        %343 = sbr.rel (%p341) target = $region20
      $region19: #{transformer_forward.2} parent=11 // pred_region
        _
      $region20: #{transformer_forward.2} parent=11 // pred_fallthru
        _
      // Predicated region
      $region21: #{transformer_forward.2} parent=11 // pred_check
        %p344 = pneg %p108
      $region22: #{transformer_forward.2} parent=11 // pred_check_branch
        %346 = sbr.rel (%p344) target = $region24
      $region23: #{transformer_forward.2} parent=11 // pred_region
        _
      $region24: #{transformer_forward.2} parent=11 // pred_fallthru
        _
      // Predicated region
      $region25: #{transformer_forward.2} parent=11 // pred_check
        %p347 = pneg %p129
      $region26: #{transformer_forward.2} parent=11 // pred_check_branch
        %349 = sbr.rel (%p347) target = $region28
      $region27: #{transformer_forward.2} parent=11 // pred_region
        _
      $region28: #{transformer_forward.2} parent=11 // pred_fallthru
        _
      // Predicated region
      $region29: #{transformer_forward.2} parent=11 // pred_check
        %p350 = pneg %p150
      $region30: #{transformer_forward.2} parent=11 // pred_check_branch
        %352 = sbr.rel (%p350) target = $region32
      $region31: #{transformer_forward.2} parent=11 // pred_region
        _
      $region32: #{transformer_forward.2} parent=11 // pred_fallthru
        _
      // Predicated region
      $region33: #{transformer_forward.2} parent=11 // pred_check
        %p353 = pneg %p171
      $region34: #{transformer_forward.2} parent=11 // pred_check_branch
        %355 = sbr.rel (%p353) target = $region36
      $region35: #{transformer_forward.2} parent=11 // pred_region
        _
      $region36: #{transformer_forward.2} parent=11 // pred_fallthru
        _
      // Predicated region
      $region37: #{transformer_forward.2} parent=11 // pred_check
        %p356 = pneg %p192
      $region38: #{transformer_forward.2} parent=11 // pred_check_branch
        %358 = sbr.rel (%p356) target = $region40
      $region39: #{transformer_forward.2} parent=11 // pred_region
        _
      $region40: #{transformer_forward.2} parent=11 // pred_fallthru
        _
      // Predicated region
      $region41: #{transformer_forward.2} parent=11 // pred_check
        %p359 = pneg %p213
      $region42: #{transformer_forward.2} parent=11 // pred_check_branch
        %361 = sbr.rel (%p359) target = $region44
      $region43: #{transformer_forward.2} parent=11 // pred_region
        _
      $region44: #{transformer_forward.2} parent=11 // pred_fallthru
        _
      // Predicated region
      $region45: #{transformer_forward.2} parent=11 // pred_check
        %p362 = pneg %p234
      $region46: #{transformer_forward.2} parent=11 // pred_check_branch
        %364 = sbr.rel (%p362) target = $region48
      $region47: #{transformer_forward.2} parent=11 // pred_region
        _
      $region48: #{transformer_forward.2} parent=11 // pred_fallthru
        _
      // Predicated region
      $region49: #{transformer_forward.2} parent=11 // pred_check
        %p365 = pneg %p255
      $region50: #{transformer_forward.2} parent=11 // pred_check_branch
        %367 = sbr.rel (%p365) target = $region52
      $region51: #{transformer_forward.2} parent=11 // pred_region
        _
      $region52: #{transformer_forward.2} parent=11 // pred_fallthru
        _
      // Predicated region
      $region53: #{transformer_forward.2} parent=11 // pred_check
        %p368 = pneg %p276
      $region54: #{transformer_forward.2} parent=11 // pred_check_branch
        %370 = sbr.rel (%p368) target = $region56
      $region55: #{transformer_forward.2} parent=11 // pred_region
        _
      $region56: #{transformer_forward.2} parent=11 // pred_fallthru
        _
      // Predicated region
      $region57: #{transformer_forward.2} parent=11 // pred_check
        %p371 = pneg %p297
      $region58: #{transformer_forward.2} parent=11 // pred_check_branch
        %373 = sbr.rel (%p371) target = $region60
      $region59: #{transformer_forward.2} parent=11 // pred_region
        _
      $region60: #{transformer_forward.2} parent=11 // pred_fallthru
        _
    $region12: #{transformer_forward.2} parent=5 // pred_fallthru
      _
    %p374 = scmp.lt.s32.totalorder %s19, 2
    // Predicated region
    $region61: #{transformer_forward.2} parent=5 // pred_check
      %p375 = pneg %p374
    $region62: #{transformer_forward.2} parent=5 // pred_check_branch
      %377 = sbr.rel (%p375) target = $region64
    $region63: #{transformer_forward.2} parent=5 // pred_region
      // Predicated region
      $region65: #{transformer_forward.2} parent=63 // pred_check
        %p378 = pneg %p39
      $region66: #{transformer_forward.2} parent=63 // pred_check_branch
        %380 = sbr.rel (%p378) target = $region68
      $region67: #{transformer_forward.2} parent=63 // pred_region
        %p381 = scmp.lt.s32.totalorder %s19, 1
        %s382 = scalar_select %p381, %s19, 1
        %s383 = smul.addr %s382, 8
        %s384 = scalar_lea.vmem %s0, %s383
      $region68: #{transformer_forward.2} parent=63 // pred_fallthru
        _
    $region64: #{transformer_forward.2} parent=5 // pred_fallthru
      _
    %p385 = scmp.le.s32.totalorder 1, %s19
    %p386 = scmp.lt.s32.totalorder %s19, 3
    %p387 = pnand %p385, %p386
    %p388 = pneg %p387
    // Predicated region
    $region69: #{transformer_forward.2} parent=5 // pred_check
      _
    $region70: #{transformer_forward.2} parent=5 // pred_check_branch
      %390 = sbr.rel (%p387) target = $region72
    $region71: #{transformer_forward.2} parent=5 // pred_region
      %s391 = ssub.s32 %s19, 1
      %p392 = scmp.lt.s32.totalorder %s24, 1
      %s393 = scalar_select %p392, %s24, 1
      %s394 = smul.addr %s393, 8
      %s395 = scalar_lea.vmem %s0, %s394
      %p396 = pneg %p45
      %p397 = pneg %p42
      %p398 = pneg %p66
      %p399 = pneg %p63
      %p400 = pneg %p87
      %p401 = pneg %p84
      %p402 = pneg %p108
      %p403 = pneg %p105
      %p404 = pneg %p129
      %p405 = pneg %p126
      %p406 = pneg %p150
      %p407 = pneg %p147
      %p408 = pneg %p171
      %p409 = pneg %p168
      %p410 = pneg %p192
      %p411 = pneg %p189
      %p412 = pneg %p213
      %p413 = pneg %p210
      %p414 = pneg %p234
      %p415 = pneg %p231
      %p416 = pneg %p255
      %p417 = pneg %p252
      %p418 = pneg %p276
      %p419 = pneg %p273
      %p420 = pneg %p297
      %p421 = pneg %p294
      %p422 = pneg %p323
      %p423 = pneg %p320
      %p424 = scmp.lt.s32.totalorder %s24, 1
      %s425 = scalar_select %p424, %s24, 1
      %s426 = smul.addr %s425, 8
      %s427 = scalar_lea.vmem %s13, %s426
      %p428 = scmp.lt.s32.totalorder %s24, 1
      %s429 = scalar_select %p428, %s24, 1
      %s430 = smul.addr %s429, 8
      %s431 = scalar_lea.vmem %s0, %s430
      %p432 = scmp.lt.s32.totalorder %s24, 1
      %s433 = scalar_select %p432, %s24, 1
      %s434 = smul.addr %s433, 8
      %s435 = scalar_lea.vmem %s13, %s434
      %v437 = vld [vmem:[%s431] sm:$0xff]
      %v438 = vld [vmem:[%s1] sm:$0x1]
      %v439 = vld [vmem:[%s2] sm:$0x1]
      %vm440 = vcmask 261120
      %v441 = vsel %vm440, %v437, 0.0
      %442 = vadd.xlane.f32.xlu0 %v441
      %v443 = vpop.xlane.xlu0 %442
      %v444 = vrcp.pop 32.0
      %v445 = vmul.f32 %v443, %v444
      %v446 = vsub.f32 %v437, %v445
      %v447 = vmul.f32 %v446, %v446
      %v448 = vsel %vm440, %v447, 0.0
      %449 = vadd.xlane.f32.xlu0 %v448
      %v450 = vpop.xlane.xlu0 %449
      %v451 = vmul.f32 %v450, %v444
      %v452 = vadd.f32 %v451, 1e-05
      %v453 = vrsqrt.pop %v452
      %v454 = vmul.f32 %v446, %v453
      %v456 = vlaneseq
      %v457 = vshrl.u32 %v456, 7
      %v458 = vsub.s32 0, %v457
      %v459 = vrot.slane %v438, %v458
      %v461 = vmul.f32 %v454, %v459
      %v463 = vlaneseq
      %v464 = vshrl.u32 %v463, 7
      %v465 = vsub.s32 0, %v464
      %v466 = vrot.slane %v439, %v465
      %v468 = vadd.f32 %v461, %v466
      %v469 = vpack.c.bf16 %v468, %v468
      %v470 = vld [vmem:[%s3] sm:$0xf]
      %v471 = vld [vmem:[%s3 + $0x4] sm:$0xf]
      %v472 = vld [vmem:[%s3 + $0x8] sm:$0xf]
      %v473 = vld [vmem:[%s3 + $0xc] sm:$0xf]
      %v474 = vld [vmem:[%s4] sm:$0x1]
      %v476 = vlaneseq
      %v477 = vshrl.u32 %v476, 7
      %v478 = vsub.s32 0, %v477
      %v479 = vrot.slane %v474, %v478
      %v485 = vunpack.c.l.b16 %v470
      %v486 = vunpack.c.l.b16 %v471
      %v487 = vunpack.c.l.b16 %v472
      %v488 = vunpack.c.l.b16 %v473
      %v489 = vpack.c.b16 %v486, %v485
      %v490 = vpack.c.b16 %v488, %v487
      %v494 = vsel %vm440, %v469, 0
      %496 = vmatprep.subr.bf16.mxu0 0
      %497 = vmatpush1.bf16.msra.mxu0 %v489
      %498 = vmatprep.subr.bf16.mxu0 0
      %499 = vmatpush1.bf16.msra.mxu0 %v490
      %500 = vmatprep.subr.bf16.mxu0 0
      %501 = vmatpush1.bf16.msra.mxu0 0
      %502 = vmatprep.subr.bf16.mxu0 0
      %503 = vmatpush1.bf16.msra.mxu0 0
      %504 = vmatprep.subr.bf16.mxu0 0
      %505 = vmatpush1.bf16.msra.mxu0 0
      %506 = vmatprep.subr.bf16.mxu0 0
      %507 = vmatpush1.bf16.msra.mxu0 0
      %508 = vmatprep.subr.bf16.mxu0 0
      %509 = vmatpush1.bf16.msra.mxu0 0
      %510 = vmatprep.subr.bf16.mxu0 0
      %511 = vmatpush1.bf16.msra.mxu0 0
      %512 = vmatprep.subr.bf16.mxu0 0
      %513 = vmatpush1.bf16.msra.mxu0 0
      %514 = vmatprep.subr.bf16.mxu0 0
      %515 = vmatpush1.bf16.msra.mxu0 0
      %516 = vmatprep.subr.bf16.mxu0 0
      %517 = vmatpush1.bf16.msra.mxu0 0
      %518 = vmatprep.subr.bf16.mxu0 0
      %519 = vmatpush1.bf16.msra.mxu0 0
      %520 = vmatprep.subr.bf16.mxu0 0
      %521 = vmatpush1.bf16.msra.mxu0 0
      %522 = vmatprep.subr.bf16.mxu0 0
      %523 = vmatpush1.bf16.msra.mxu0 0
      %524 = vmatprep.subr.bf16.mxu0 0
      %525 = vmatpush1.bf16.msra.mxu0 0
      %526 = vmatprep.subr.bf16.mxu0 0
      %527 = vmatpush1.bf16.msra.mxu0 0
      %528 = vmatprep.mubr.bf16.mxu0 0
      %529 = vmatmul.mubr.bf16.gmra.mrb[0].mxu0 %v494
      %v530 = vpop.f32.mrb[0].mxu0
      %v531 = vadd.f32 %v479, %v530
      %v532 = vpop.f32.mrb[0].mxu0
      %v533 = vpop.f32.mrb[0].mxu0
      %v534 = vpop.f32.mrb[0].mxu0
      %535 = vdwg.mxu0
      %v536 = vpack.c.bf16 %v531, %v531
      %vm537 = vcmask 781312
      %538 = vst.msk [vmem:[#allocation2] sm:$0xf] %vm537, %v536
      %v539 = vld [vmem:[#allocation2] sm:$0xf]
      %541 = vrot.lane.b32.xlu0 %v539, 120
      %v542 = vpop.permute.xlu0 %541
      %543 = vrot.lane.b32.xlu0 %v539, 112
      %v544 = vpop.permute.xlu0 %543
      %545 = vrot.lane.b32.xlu0 %v539, 104
      %v546 = vpop.permute.xlu0 %545
      %547 = vrot.lane.b32.xlu0 %v539, 96
      %v548 = vpop.permute.xlu0 %547
      %549 = vrot.lane.b32.xlu0 %v542, 96
      %v550 = vpop.permute.xlu0 %549
      %551 = vrot.lane.b32.xlu0 %v544, 96
      %v552 = vpop.permute.xlu0 %551
      %553 = vrot.lane.b32.xlu0 %v546, 96
      %v554 = vpop.permute.xlu0 %553
      %v557 = vpack.i.b16 %v550, %v548
      %v558 = vshrl.u32 %v548, 16
      %v559 = vshrl.u32 %v550, 16
      %v560 = vpack.i.b16 %v559, %v558
      %v563 = vpack.i.b16 %v554, %v552
      %v564 = vshrl.u32 %v552, 16
      %v565 = vshrl.u32 %v554, 16
      %v566 = vpack.i.b16 %v565, %v564
      %v569 = vunpack.c.l.s4 1983009808
      %v570 = vunpack.c.0.s8 %v569
      %v571 = vlaneseq
      %v572 = vshrl.u32 %v571, 7
      %v573 = vsub.s32 %v570, %v572
      %v574 = vrot.slane %v557, %v573
      %v577 = vunpack.c.l.s4 1983009808
      %v578 = vunpack.c.0.s8 %v577
      %v579 = vlaneseq
      %v580 = vshrl.u32 %v579, 7
      %v581 = vsub.s32 %v578, %v580
      %v582 = vrot.slane %v563, %v581
      %v583 = vcombine.low %v574, %v582
      %v584 = vcombine.high %v574, %v582
      %v586 = vunpack.c.l.s4 1934713408
      %v587 = vunpack.c.0.s8 %v586
      %v588 = vlaneseq
      %v589 = vshrl.u32 %v588, 7
      %v590 = vsub.s32 %v587, %v589
      %v591 = vrot.slane %v583, %v590
      %v593 = vunpack.c.l.s4 1934713408
      %v594 = vunpack.c.0.s8 %v593
      %v595 = vlaneseq
      %v596 = vshrl.u32 %v595, 7
      %v597 = vsub.s32 %v594, %v596
      %v598 = vrot.slane %v584, %v597
      %v599 = vcombine.high %v591, 0
      %v600 = vcombine.high %v598, 0
      %v603 = vunpack.c.l.s4 1983009808
      %v604 = vunpack.c.0.s8 %v603
      %v605 = vlaneseq
      %v606 = vshrl.u32 %v605, 7
      %v607 = vsub.s32 %v604, %v606
      %v608 = vrot.slane %v560, %v607
      %v611 = vunpack.c.l.s4 1983009808
      %v612 = vunpack.c.0.s8 %v611
      %v613 = vlaneseq
      %v614 = vshrl.u32 %v613, 7
      %v615 = vsub.s32 %v612, %v614
      %v616 = vrot.slane %v566, %v615
      %v617 = vcombine.low %v608, %v616
      %v618 = vcombine.high %v608, %v616
      %v620 = vunpack.c.l.s4 1934713408
      %v621 = vunpack.c.0.s8 %v620
      %v622 = vlaneseq
      %v623 = vshrl.u32 %v622, 7
      %v624 = vsub.s32 %v621, %v623
      %v625 = vrot.slane %v617, %v624
      %v627 = vunpack.c.l.s4 1934713408
      %v628 = vunpack.c.0.s8 %v627
      %v629 = vlaneseq
      %v630 = vshrl.u32 %v629, 7
      %v631 = vsub.s32 %v628, %v630
      %v632 = vrot.slane %v618, %v631
      %v633 = vcombine.high %v625, 0
      %v634 = vcombine.high %v632, 0
      %v635 = vcombine.low %v591, %v598
      %v637 = vunpack.c.l.s4 1983009808
      %v638 = vunpack.c.0.s8 %v637
      %v639 = vlaneseq
      %v640 = vshrl.u32 %v639, 7
      %v641 = vsub.s32 %v638, %v640
      %v642 = vrot.slane %v635, %v641
      %v643 = vcombine.low %v599, %v600
      %v645 = vunpack.c.l.s4 1983009808
      %v646 = vunpack.c.0.s8 %v645
      %v647 = vlaneseq
      %v648 = vshrl.u32 %v647, 7
      %v649 = vsub.s32 %v646, %v648
      %v650 = vrot.slane %v643, %v649
      %v651 = vcombine.low %v642, %v650
      %v653 = vunpack.c.l.s4 1934713408
      %v654 = vunpack.c.0.s8 %v653
      %v655 = vlaneseq
      %v656 = vshrl.u32 %v655, 7
      %v657 = vsub.s32 %v654, %v656
      %v658 = vrot.slane %v651, %v657
      %v659 = vcombine.high %v658, 0
      %v660 = vcombine.low %v625, %v632
      %v662 = vunpack.c.l.s4 1983009808
      %v663 = vunpack.c.0.s8 %v662
      %v664 = vlaneseq
      %v665 = vshrl.u32 %v664, 7
      %v666 = vsub.s32 %v663, %v665
      %v667 = vrot.slane %v660, %v666
      %v668 = vcombine.low %v633, %v634
      %v670 = vunpack.c.l.s4 1983009808
      %v671 = vunpack.c.0.s8 %v670
      %v672 = vlaneseq
      %v673 = vshrl.u32 %v672, 7
      %v674 = vsub.s32 %v671, %v673
      %v675 = vrot.slane %v668, %v674
      %v676 = vcombine.low %v667, %v675
      %v678 = vunpack.c.l.s4 1934713408
      %v679 = vunpack.c.0.s8 %v678
      %v680 = vlaneseq
      %v681 = vshrl.u32 %v680, 7
      %v682 = vsub.s32 %v679, %v681
      %v683 = vrot.slane %v676, %v682
      %v684 = vcombine.high %v683, 0
      %v687 = vpack.i.b16 %v683, %v658
      %v688 = vshrl.u32 %v658, 16
      %v689 = vshrl.u32 %v683, 16
      %v690 = vpack.i.b16 %v689, %v688
      %v693 = vpack.i.b16 %v684, %v659
      %v694 = vshrl.u32 %v659, 16
      %v695 = vshrl.u32 %v684, 16
      %v696 = vpack.i.b16 %v695, %v694
      %697 = vrot.lane.b32.xlu0 %v539, 64
      %v698 = vpop.permute.xlu0 %697
      %699 = vrot.lane.b32.xlu0 %v542, 64
      %v700 = vpop.permute.xlu0 %699
      %701 = vrot.lane.b32.xlu0 %v544, 64
      %v702 = vpop.permute.xlu0 %701
      %703 = vrot.lane.b32.xlu0 %v546, 64
      %v704 = vpop.permute.xlu0 %703
      %v707 = vpack.i.b16 %v700, %v698
      %v708 = vshrl.u32 %v698, 16
      %v709 = vshrl.u32 %v700, 16
      %v710 = vpack.i.b16 %v709, %v708
      %v713 = vpack.i.b16 %v704, %v702
      %v714 = vshrl.u32 %v702, 16
      %v715 = vshrl.u32 %v704, 16
      %v716 = vpack.i.b16 %v715, %v714
      %v719 = vunpack.c.l.s4 1983009808
      %v720 = vunpack.c.0.s8 %v719
      %v721 = vlaneseq
      %v722 = vshrl.u32 %v721, 7
      %v723 = vsub.s32 %v720, %v722
      %v724 = vrot.slane %v707, %v723
      %v727 = vunpack.c.l.s4 1983009808
      %v728 = vunpack.c.0.s8 %v727
      %v729 = vlaneseq
      %v730 = vshrl.u32 %v729, 7
      %v731 = vsub.s32 %v728, %v730
      %v732 = vrot.slane %v713, %v731
      %v733 = vcombine.low %v724, %v732
      %v734 = vcombine.high %v724, %v732
      %v736 = vunpack.c.l.s4 1934713408
      %v737 = vunpack.c.0.s8 %v736
      %v738 = vlaneseq
      %v739 = vshrl.u32 %v738, 7
      %v740 = vsub.s32 %v737, %v739
      %v741 = vrot.slane %v733, %v740
      %v743 = vunpack.c.l.s4 1934713408
      %v744 = vunpack.c.0.s8 %v743
      %v745 = vlaneseq
      %v746 = vshrl.u32 %v745, 7
      %v747 = vsub.s32 %v744, %v746
      %v748 = vrot.slane %v734, %v747
      %v749 = vcombine.high %v741, 0
      %v750 = vcombine.high %v748, 0
      %v753 = vunpack.c.l.s4 1983009808
      %v754 = vunpack.c.0.s8 %v753
      %v755 = vlaneseq
      %v756 = vshrl.u32 %v755, 7
      %v757 = vsub.s32 %v754, %v756
      %v758 = vrot.slane %v710, %v757
      %v761 = vunpack.c.l.s4 1983009808
      %v762 = vunpack.c.0.s8 %v761
      %v763 = vlaneseq
      %v764 = vshrl.u32 %v763, 7
      %v765 = vsub.s32 %v762, %v764
      %v766 = vrot.slane %v716, %v765
      %v767 = vcombine.low %v758, %v766
      %v768 = vcombine.high %v758, %v766
      %v770 = vunpack.c.l.s4 1934713408
      %v771 = vunpack.c.0.s8 %v770
      %v772 = vlaneseq
      %v773 = vshrl.u32 %v772, 7
      %v774 = vsub.s32 %v771, %v773
      %v775 = vrot.slane %v767, %v774
      %v777 = vunpack.c.l.s4 1934713408
      %v778 = vunpack.c.0.s8 %v777
      %v779 = vlaneseq
      %v780 = vshrl.u32 %v779, 7
      %v781 = vsub.s32 %v778, %v780
      %v782 = vrot.slane %v768, %v781
      %v783 = vcombine.high %v775, 0
      %v784 = vcombine.high %v782, 0
      %v785 = vcombine.low %v741, %v748
      %v787 = vunpack.c.l.s4 1983009808
      %v788 = vunpack.c.0.s8 %v787
      %v789 = vlaneseq
      %v790 = vshrl.u32 %v789, 7
      %v791 = vsub.s32 %v788, %v790
      %v792 = vrot.slane %v785, %v791
      %v793 = vcombine.low %v749, %v750
      %v795 = vunpack.c.l.s4 1983009808
      %v796 = vunpack.c.0.s8 %v795
      %v797 = vlaneseq
      %v798 = vshrl.u32 %v797, 7
      %v799 = vsub.s32 %v796, %v798
      %v800 = vrot.slane %v793, %v799
      %v801 = vcombine.low %v792, %v800
      %v803 = vunpack.c.l.s4 1934713408
      %v804 = vunpack.c.0.s8 %v803
      %v805 = vlaneseq
      %v806 = vshrl.u32 %v805, 7
      %v807 = vsub.s32 %v804, %v806
      %v808 = vrot.slane %v801, %v807
      %v809 = vcombine.high %v808, 0
      %v810 = vcombine.low %v775, %v782
      %v812 = vunpack.c.l.s4 1983009808
      %v813 = vunpack.c.0.s8 %v812
      %v814 = vlaneseq
      %v815 = vshrl.u32 %v814, 7
      %v816 = vsub.s32 %v813, %v815
      %v817 = vrot.slane %v810, %v816
      %v818 = vcombine.low %v783, %v784
      %v820 = vunpack.c.l.s4 1983009808
      %v821 = vunpack.c.0.s8 %v820
      %v822 = vlaneseq
      %v823 = vshrl.u32 %v822, 7
      %v824 = vsub.s32 %v821, %v823
      %v825 = vrot.slane %v818, %v824
      %v826 = vcombine.low %v817, %v825
      %v828 = vunpack.c.l.s4 1934713408
      %v829 = vunpack.c.0.s8 %v828
      %v830 = vlaneseq
      %v831 = vshrl.u32 %v830, 7
      %v832 = vsub.s32 %v829, %v831
      %v833 = vrot.slane %v826, %v832
      %v834 = vcombine.high %v833, 0
      %v837 = vpack.i.b16 %v833, %v808
      %v838 = vshrl.u32 %v808, 16
      %v839 = vshrl.u32 %v833, 16
      %v840 = vpack.i.b16 %v839, %v838
      %v843 = vpack.i.b16 %v834, %v809
      %v844 = vshrl.u32 %v809, 16
      %v845 = vshrl.u32 %v834, 16
      %v846 = vpack.i.b16 %v845, %v844
      %v849 = vpack.i.b16 %v542, %v539
      %v850 = vshrl.u32 %v539, 16
      %v851 = vshrl.u32 %v542, 16
      %v852 = vpack.i.b16 %v851, %v850
      %v855 = vpack.i.b16 %v546, %v544
      %v856 = vshrl.u32 %v544, 16
      %v857 = vshrl.u32 %v546, 16
      %v858 = vpack.i.b16 %v857, %v856
      %v861 = vunpack.c.l.s4 1983009808
      %v862 = vunpack.c.0.s8 %v861
      %v863 = vlaneseq
      %v864 = vshrl.u32 %v863, 7
      %v865 = vsub.s32 %v862, %v864
      %v866 = vrot.slane %v849, %v865
      %v869 = vunpack.c.l.s4 1983009808
      %v870 = vunpack.c.0.s8 %v869
      %v871 = vlaneseq
      %v872 = vshrl.u32 %v871, 7
      %v873 = vsub.s32 %v870, %v872
      %v874 = vrot.slane %v855, %v873
      %v875 = vcombine.low %v866, %v874
      %v876 = vcombine.high %v866, %v874
      %v878 = vunpack.c.l.s4 1934713408
      %v879 = vunpack.c.0.s8 %v878
      %v880 = vlaneseq
      %v881 = vshrl.u32 %v880, 7
      %v882 = vsub.s32 %v879, %v881
      %v883 = vrot.slane %v875, %v882
      %v885 = vunpack.c.l.s4 1934713408
      %v886 = vunpack.c.0.s8 %v885
      %v887 = vlaneseq
      %v888 = vshrl.u32 %v887, 7
      %v889 = vsub.s32 %v886, %v888
      %v890 = vrot.slane %v876, %v889
      %v891 = vcombine.high %v883, 0
      %v892 = vcombine.high %v890, 0
      %v895 = vunpack.c.l.s4 1983009808
      %v896 = vunpack.c.0.s8 %v895
      %v897 = vlaneseq
      %v898 = vshrl.u32 %v897, 7
      %v899 = vsub.s32 %v896, %v898
      %v900 = vrot.slane %v852, %v899
      %v903 = vunpack.c.l.s4 1983009808
      %v904 = vunpack.c.0.s8 %v903
      %v905 = vlaneseq
      %v906 = vshrl.u32 %v905, 7
      %v907 = vsub.s32 %v904, %v906
      %v908 = vrot.slane %v858, %v907
      %v909 = vcombine.low %v900, %v908
      %v910 = vcombine.high %v900, %v908
      %v912 = vunpack.c.l.s4 1934713408
      %v913 = vunpack.c.0.s8 %v912
      %v914 = vlaneseq
      %v915 = vshrl.u32 %v914, 7
      %v916 = vsub.s32 %v913, %v915
      %v917 = vrot.slane %v909, %v916
      %v919 = vunpack.c.l.s4 1934713408
      %v920 = vunpack.c.0.s8 %v919
      %v921 = vlaneseq
      %v922 = vshrl.u32 %v921, 7
      %v923 = vsub.s32 %v920, %v922
      %v924 = vrot.slane %v910, %v923
      %v925 = vcombine.high %v917, 0
      %v926 = vcombine.high %v924, 0
      %v927 = vcombine.low %v883, %v890
      %v929 = vunpack.c.l.s4 1983009808
      %v930 = vunpack.c.0.s8 %v929
      %v931 = vlaneseq
      %v932 = vshrl.u32 %v931, 7
      %v933 = vsub.s32 %v930, %v932
      %v934 = vrot.slane %v927, %v933
      %v935 = vcombine.low %v891, %v892
      %v937 = vunpack.c.l.s4 1983009808
      %v938 = vunpack.c.0.s8 %v937
      %v939 = vlaneseq
      %v940 = vshrl.u32 %v939, 7
      %v941 = vsub.s32 %v938, %v940
      %v942 = vrot.slane %v935, %v941
      %v943 = vcombine.low %v934, %v942
      %v945 = vunpack.c.l.s4 1934713408
      %v946 = vunpack.c.0.s8 %v945
      %v947 = vlaneseq
      %v948 = vshrl.u32 %v947, 7
      %v949 = vsub.s32 %v946, %v948
      %v950 = vrot.slane %v943, %v949
      %v951 = vcombine.high %v950, 0
      %v952 = vcombine.low %v917, %v924
      %v954 = vunpack.c.l.s4 1983009808
      %v955 = vunpack.c.0.s8 %v954
      %v956 = vlaneseq
      %v957 = vshrl.u32 %v956, 7
      %v958 = vsub.s32 %v955, %v957
      %v959 = vrot.slane %v952, %v958
      %v960 = vcombine.low %v925, %v926
      %v962 = vunpack.c.l.s4 1983009808
      %v963 = vunpack.c.0.s8 %v962
      %v964 = vlaneseq
      %v965 = vshrl.u32 %v964, 7
      %v966 = vsub.s32 %v963, %v965
      %v967 = vrot.slane %v960, %v966
      %v968 = vcombine.low %v959, %v967
      %v970 = vunpack.c.l.s4 1934713408
      %v971 = vunpack.c.0.s8 %v970
      %v972 = vlaneseq
      %v973 = vshrl.u32 %v972, 7
      %v974 = vsub.s32 %v971, %v973
      %v975 = vrot.slane %v968, %v974
      %v976 = vcombine.high %v975, 0
      %v979 = vpack.i.b16 %v975, %v950
      %v980 = vshrl.u32 %v950, 16
      %v981 = vshrl.u32 %v975, 16
      %v982 = vpack.i.b16 %v981, %v980
      %v985 = vpack.i.b16 %v976, %v951
      %v986 = vshrl.u32 %v951, 16
      %v987 = vshrl.u32 %v976, 16
      %v988 = vpack.i.b16 %v987, %v986
      %vm989 = vcmask 64512
      %v991 = vsel %vm989, %v979, 0
      %v994 = vsel %vm989, %v687, 0
      %996 = vmatprep.subr.bf16.mxu0 0
      %997 = vmatpush1.bf16.xpose.msra.mxu0 %v994
      %998 = vmatprep.subr.bf16.mxu0 0
      %999 = vmatpush1.bf16.xpose.msra.mxu0 0
      %1000 = vmatprep.subr.bf16.mxu0 0
      %1001 = vmatpush1.bf16.xpose.msra.mxu0 0
      %1002 = vmatprep.subr.bf16.mxu0 0
      %1003 = vmatpush1.bf16.xpose.msra.mxu0 0
      %1004 = vmatprep.subr.bf16.mxu0 0
      %1005 = vmatpush1.bf16.xpose.msra.mxu0 0
      %1006 = vmatprep.subr.bf16.mxu0 0
      %1007 = vmatpush1.bf16.xpose.msra.mxu0 0
      %1008 = vmatprep.subr.bf16.mxu0 0
      %1009 = vmatpush1.bf16.xpose.msra.mxu0 0
      %1010 = vmatprep.subr.bf16.mxu0 0
      %1011 = vmatpush1.bf16.xpose.msra.mxu0 0
      %1012 = vmatprep.subr.bf16.mxu0 0
      %1013 = vmatpush1.bf16.xpose.msra.mxu0 0
      %1014 = vmatprep.subr.bf16.mxu0 0
      %1015 = vmatpush1.bf16.xpose.msra.mxu0 0
      %1016 = vmatprep.subr.bf16.mxu0 0
      %1017 = vmatpush1.bf16.xpose.msra.mxu0 0
      %1018 = vmatprep.subr.bf16.mxu0 0
      %1019 = vmatpush1.bf16.xpose.msra.mxu0 0
      %1020 = vmatprep.subr.bf16.mxu0 0
      %1021 = vmatpush1.bf16.xpose.msra.mxu0 0
      %1022 = vmatprep.subr.bf16.mxu0 0
      %1023 = vmatpush1.bf16.xpose.msra.mxu0 0
      %1024 = vmatprep.subr.bf16.mxu0 0
      %1025 = vmatpush1.bf16.xpose.msra.mxu0 0
      %1026 = vmatprep.subr.bf16.mxu0 0
      %1027 = vmatpush1.bf16.xpose.msra.mxu0 0
      %1028 = vmatprep.mubr.bf16.mxu0 0
      %1029 = vmatmul.mubr.bf16.gmra.mrb[0].mxu0 %v991
      %v1030 = vpop.f32.mrb[0].mxu0
      %v1031 = vadd.f32 0.0, %v1030
      %v1032 = vpop.f32.mrb[0].mxu0
      %v1033 = vpop.f32.mrb[0].mxu0
      %v1034 = vpop.f32.mrb[0].mxu0
      %1035 = vdwg.mxu0
      %v1037 = vsel %vm989, %v982, 0
      %v1040 = vsel %vm989, %v690, 0
      %1042 = vmatprep.subr.bf16.mxu0 0
      %1043 = vmatpush1.bf16.xpose.msra.mxu0 %v1040
      %1044 = vmatprep.subr.bf16.mxu0 0
      %1045 = vmatpush1.bf16.xpose.msra.mxu0 0
      %1046 = vmatprep.subr.bf16.mxu0 0
      %1047 = vmatpush1.bf16.xpose.msra.mxu0 0
      %1048 = vmatprep.subr.bf16.mxu0 0
      %1049 = vmatpush1.bf16.xpose.msra.mxu0 0
      %1050 = vmatprep.subr.bf16.mxu0 0
      %1051 = vmatpush1.bf16.xpose.msra.mxu0 0
      %1052 = vmatprep.subr.bf16.mxu0 0
      %1053 = vmatpush1.bf16.xpose.msra.mxu0 0
      %1054 = vmatprep.subr.bf16.mxu0 0
      %1055 = vmatpush1.bf16.xpose.msra.mxu0 0
      %1056 = vmatprep.subr.bf16.mxu0 0
      %1057 = vmatpush1.bf16.xpose.msra.mxu0 0
      %1058 = vmatprep.subr.bf16.mxu0 0
      %1059 = vmatpush1.bf16.xpose.msra.mxu0 0
      %1060 = vmatprep.subr.bf16.mxu0 0
      %1061 = vmatpush1.bf16.xpose.msra.mxu0 0
      %1062 = vmatprep.subr.bf16.mxu0 0
      %1063 = vmatpush1.bf16.xpose.msra.mxu0 0
      %1064 = vmatprep.subr.bf16.mxu0 0
      %1065 = vmatpush1.bf16.xpose.msra.mxu0 0
      %1066 = vmatprep.subr.bf16.mxu0 0
      %1067 = vmatpush1.bf16.xpose.msra.mxu0 0
      %1068 = vmatprep.subr.bf16.mxu0 0
      %1069 = vmatpush1.bf16.xpose.msra.mxu0 0
      %1070 = vmatprep.subr.bf16.mxu0 0
      %1071 = vmatpush1.bf16.xpose.msra.mxu0 0
      %1072 = vmatprep.subr.bf16.mxu0 0
      %1073 = vmatpush1.bf16.xpose.msra.mxu0 0
      %1074 = vmatprep.mubr.bf16.mxu0 0
      %1075 = vmatmul.mubr.bf16.gmra.mrb[0].mxu0 %v1037
      %v1076 = vpop.f32.mrb[0].mxu0
      %v1077 = vadd.f32 0.0, %v1076
      %v1078 = vpop.f32.mrb[0].mxu0
      %v1079 = vpop.f32.mrb[0].mxu0
      %v1080 = vpop.f32.mrb[0].mxu0
      %1081 = vdwg.mxu0
      %v1083 = vsel %vm989, %v985, 0
      %v1086 = vsel %vm989, %v693, 0
      %1088 = vmatprep.subr.bf16.mxu0 0
      %1089 = vmatpush1.bf16.xpose.msra.mxu0 %v1086
      %1090 = vmatprep.subr.bf16.mxu0 0
      %1091 = vmatpush1.bf16.xpose.msra.mxu0 0
      %1092 = vmatprep.subr.bf16.mxu0 0
      %1093 = vmatpush1.bf16.xpose.msra.mxu0 0
      %1094 = vmatprep.subr.bf16.mxu0 0
      %1095 = vmatpush1.bf16.xpose.msra.mxu0 0
      %1096 = vmatprep.subr.bf16.mxu0 0
      %1097 = vmatpush1.bf16.xpose.msra.mxu0 0
      %1098 = vmatprep.subr.bf16.mxu0 0
      %1099 = vmatpush1.bf16.xpose.msra.mxu0 0
      %1100 = vmatprep.subr.bf16.mxu0 0
      %1101 = vmatpush1.bf16.xpose.msra.mxu0 0
      %1102 = vmatprep.subr.bf16.mxu0 0
      %1103 = vmatpush1.bf16.xpose.msra.mxu0 0
      %1104 = vmatprep.subr.bf16.mxu0 0
      %1105 = vmatpush1.bf16.xpose.msra.mxu0 0
      %1106 = vmatprep.subr.bf16.mxu0 0
      %1107 = vmatpush1.bf16.xpose.msra.mxu0 0
      %1108 = vmatprep.subr.bf16.mxu0 0
      %1109 = vmatpush1.bf16.xpose.msra.mxu0 0
      %1110 = vmatprep.subr.bf16.mxu0 0
      %1111 = vmatpush1.bf16.xpose.msra.mxu0 0
      %1112 = vmatprep.subr.bf16.mxu0 0
      %1113 = vmatpush1.bf16.xpose.msra.mxu0 0
      %1114 = vmatprep.subr.bf16.mxu0 0
      %1115 = vmatpush1.bf16.xpose.msra.mxu0 0
      %1116 = vmatprep.subr.bf16.mxu0 0
      %1117 = vmatpush1.bf16.xpose.msra.mxu0 0
      %1118 = vmatprep.subr.bf16.mxu0 0
      %1119 = vmatpush1.bf16.xpose.msra.mxu0 0
      %1120 = vmatprep.mubr.bf16.mxu0 0
      %1121 = vmatmul.mubr.bf16.gmra.mrb[0].mxu0 %v1083
      %v1122 = vpop.f32.mrb[0].mxu0
      %v1123 = vadd.f32 0.0, %v1122
      %v1124 = vpop.f32.mrb[0].mxu0
      %v1125 = vpop.f32.mrb[0].mxu0
      %v1126 = vpop.f32.mrb[0].mxu0
      %1127 = vdwg.mxu0
      %v1129 = vsel %vm989, %v988, 0
      %v1132 = vsel %vm989, %v696, 0
      %1134 = vmatprep.subr.bf16.mxu0 0
      %1135 = vmatpush1.bf16.xpose.msra.mxu0 %v1132
      %1136 = vmatprep.subr.bf16.mxu0 0
      %1137 = vmatpush1.bf16.xpose.msra.mxu0 0
      %1138 = vmatprep.subr.bf16.mxu0 0
      %1139 = vmatpush1.bf16.xpose.msra.mxu0 0
      %1140 = vmatprep.subr.bf16.mxu0 0
      %1141 = vmatpush1.bf16.xpose.msra.mxu0 0
      %1142 = vmatprep.subr.bf16.mxu0 0
      %1143 = vmatpush1.bf16.xpose.msra.mxu0 0
      %1144 = vmatprep.subr.bf16.mxu0 0
      %1145 = vmatpush1.bf16.xpose.msra.mxu0 0
      %1146 = vmatprep.subr.bf16.mxu0 0
      %1147 = vmatpush1.bf16.xpose.msra.mxu0 0
      %1148 = vmatprep.subr.bf16.mxu0 0
      %1149 = vmatpush1.bf16.xpose.msra.mxu0 0
      %1150 = vmatprep.subr.bf16.mxu0 0
      %1151 = vmatpush1.bf16.xpose.msra.mxu0 0
      %1152 = vmatprep.subr.bf16.mxu0 0
      %1153 = vmatpush1.bf16.xpose.msra.mxu0 0
      %1154 = vmatprep.subr.bf16.mxu0 0
      %1155 = vmatpush1.bf16.xpose.msra.mxu0 0
      %1156 = vmatprep.subr.bf16.mxu0 0
      %1157 = vmatpush1.bf16.xpose.msra.mxu0 0
      %1158 = vmatprep.subr.bf16.mxu0 0
      %1159 = vmatpush1.bf16.xpose.msra.mxu0 0
      %1160 = vmatprep.subr.bf16.mxu0 0
      %1161 = vmatpush1.bf16.xpose.msra.mxu0 0
      %1162 = vmatprep.subr.bf16.mxu0 0
      %1163 = vmatpush1.bf16.xpose.msra.mxu0 0
      %1164 = vmatprep.subr.bf16.mxu0 0
      %1165 = vmatpush1.bf16.xpose.msra.mxu0 0
      %1166 = vmatprep.mubr.bf16.mxu0 0
      %1167 = vmatmul.mubr.bf16.gmra.mrb[0].mxu0 %v1129
      %v1168 = vpop.f32.mrb[0].mxu0
      %v1169 = vadd.f32 0.0, %v1168
      %v1170 = vpop.f32.mrb[0].mxu0
      %v1171 = vpop.f32.mrb[0].mxu0
      %v1172 = vpop.f32.mrb[0].mxu0
      %1173 = vdwg.mxu0
      %v1174 = vsel %vm989, %v1031, -inf
      %1175 = vmax.xlane.f32.xlu0 %v1174
      %v1176 = vpop.xlane.xlu0 %1175
      %v1177 = vsel %vm989, %v1077, -inf
      %1178 = vmax.xlane.f32.xlu0 %v1177
      %v1179 = vpop.xlane.xlu0 %1178
      %v1180 = vsel %vm989, %v1123, -inf
      %1181 = vmax.xlane.f32.xlu0 %v1180
      %v1182 = vpop.xlane.xlu0 %1181
      %v1183 = vsel %vm989, %v1169, -inf
      %1184 = vmax.xlane.f32.xlu0 %v1183
      %v1185 = vpop.xlane.xlu0 %1184
      %v1186 = vsub.f32 %v1031, %v1176
      %v1187 = vsub.f32 %v1077, %v1179
      %v1188 = vsub.f32 %v1123, %v1182
      %v1189 = vsub.f32 %v1169, %v1185
      %v1190 = vmul.f32 %v1186, 1.442695
      %v1191 = vpow.pop %v1190
      %v1192 = vmul.f32 %v1187, 1.442695
      %v1193 = vpow.pop %v1192
      %v1194 = vmul.f32 %v1188, 1.442695
      %v1195 = vpow.pop %v1194
      %v1196 = vmul.f32 %v1189, 1.442695
      %v1197 = vpow.pop %v1196
      %v1198 = vsel %vm989, %v1191, 0.0
      %1199 = vadd.xlane.f32.xlu0 %v1198
      %v1200 = vpop.xlane.xlu0 %1199
      %v1201 = vsel %vm989, %v1193, 0.0
      %1202 = vadd.xlane.f32.xlu0 %v1201
      %v1203 = vpop.xlane.xlu0 %1202
      %v1204 = vsel %vm989, %v1195, 0.0
      %1205 = vadd.xlane.f32.xlu0 %v1204
      %v1206 = vpop.xlane.xlu0 %1205
      %v1207 = vsel %vm989, %v1197, 0.0
      %1208 = vadd.xlane.f32.xlu0 %v1207
      %v1209 = vpop.xlane.xlu0 %1208
      %v1210 = vrcp.pop %v1200
      %v1211 = vrcp.pop %v1203
      %v1212 = vrcp.pop %v1206
      %v1213 = vrcp.pop %v1209
      %v1214 = vmul.f32 %v1191, %v1210
      %v1215 = vmul.f32 %v1193, %v1211
      %v1216 = vmul.f32 %v1195, %v1212
      %v1217 = vmul.f32 %v1197, %v1213
      %v1218 = vpack.c.bf16 %v1214, %v1214
      %v1219 = vpack.c.bf16 %v1215, %v1215
      %v1220 = vpack.c.bf16 %v1216, %v1216
      %v1221 = vpack.c.bf16 %v1217, %v1217
      %v1223 = vsel %vm989, %v1218, 0
      %vm1225 = vcmask 1043456
      %v1227 = vsel %vm1225, %v837, 0
      %1229 = vmatprep.subr.bf16.mxu0 0
      %1230 = vmatpush1.bf16.msra.mxu0 %v1227
      %1231 = vmatprep.subr.bf16.mxu0 0
      %1232 = vmatpush1.bf16.msra.mxu0 0
      %1233 = vmatprep.subr.bf16.mxu0 0
      %1234 = vmatpush1.bf16.msra.mxu0 0
      %1235 = vmatprep.subr.bf16.mxu0 0
      %1236 = vmatpush1.bf16.msra.mxu0 0
      %1237 = vmatprep.subr.bf16.mxu0 0
      %1238 = vmatpush1.bf16.msra.mxu0 0
      %1239 = vmatprep.subr.bf16.mxu0 0
      %1240 = vmatpush1.bf16.msra.mxu0 0
      %1241 = vmatprep.subr.bf16.mxu0 0
      %1242 = vmatpush1.bf16.msra.mxu0 0
      %1243 = vmatprep.subr.bf16.mxu0 0
      %1244 = vmatpush1.bf16.msra.mxu0 0
      %1245 = vmatprep.subr.bf16.mxu0 0
      %1246 = vmatpush1.bf16.msra.mxu0 0
      %1247 = vmatprep.subr.bf16.mxu0 0
      %1248 = vmatpush1.bf16.msra.mxu0 0
      %1249 = vmatprep.subr.bf16.mxu0 0
      %1250 = vmatpush1.bf16.msra.mxu0 0
      %1251 = vmatprep.subr.bf16.mxu0 0
      %1252 = vmatpush1.bf16.msra.mxu0 0
      %1253 = vmatprep.subr.bf16.mxu0 0
      %1254 = vmatpush1.bf16.msra.mxu0 0
      %1255 = vmatprep.subr.bf16.mxu0 0
      %1256 = vmatpush1.bf16.msra.mxu0 0
      %1257 = vmatprep.subr.bf16.mxu0 0
      %1258 = vmatpush1.bf16.msra.mxu0 0
      %1259 = vmatprep.subr.bf16.mxu0 0
      %1260 = vmatpush1.bf16.msra.mxu0 0
      %1261 = vmatprep.mubr.bf16.mxu0 0
      %1262 = vmatmul.mubr.bf16.gmra.mrb[0].mxu0 %v1223
      %v1263 = vpop.f32.mrb[0].mxu0
      %v1264 = vadd.f32 0.0, %v1263
      %v1265 = vpop.f32.mrb[0].mxu0
      %v1266 = vpop.f32.mrb[0].mxu0
      %v1267 = vpop.f32.mrb[0].mxu0
      %1268 = vdwg.mxu0
      %v1270 = vsel %vm989, %v1219, 0
      %v1273 = vsel %vm1225, %v840, 0
      %1275 = vmatprep.subr.bf16.mxu0 0
      %1276 = vmatpush1.bf16.msra.mxu0 %v1273
      %1277 = vmatprep.subr.bf16.mxu0 0
      %1278 = vmatpush1.bf16.msra.mxu0 0
      %1279 = vmatprep.subr.bf16.mxu0 0
      %1280 = vmatpush1.bf16.msra.mxu0 0
      %1281 = vmatprep.subr.bf16.mxu0 0
      %1282 = vmatpush1.bf16.msra.mxu0 0
      %1283 = vmatprep.subr.bf16.mxu0 0
      %1284 = vmatpush1.bf16.msra.mxu0 0
      %1285 = vmatprep.subr.bf16.mxu0 0
      %1286 = vmatpush1.bf16.msra.mxu0 0
      %1287 = vmatprep.subr.bf16.mxu0 0
      %1288 = vmatpush1.bf16.msra.mxu0 0
      %1289 = vmatprep.subr.bf16.mxu0 0
      %1290 = vmatpush1.bf16.msra.mxu0 0
      %1291 = vmatprep.subr.bf16.mxu0 0
      %1292 = vmatpush1.bf16.msra.mxu0 0
      %1293 = vmatprep.subr.bf16.mxu0 0
      %1294 = vmatpush1.bf16.msra.mxu0 0
      %1295 = vmatprep.subr.bf16.mxu0 0
      %1296 = vmatpush1.bf16.msra.mxu0 0
      %1297 = vmatprep.subr.bf16.mxu0 0
      %1298 = vmatpush1.bf16.msra.mxu0 0
      %1299 = vmatprep.subr.bf16.mxu0 0
      %1300 = vmatpush1.bf16.msra.mxu0 0
      %1301 = vmatprep.subr.bf16.mxu0 0
      %1302 = vmatpush1.bf16.msra.mxu0 0
      %1303 = vmatprep.subr.bf16.mxu0 0
      %1304 = vmatpush1.bf16.msra.mxu0 0
      %1305 = vmatprep.subr.bf16.mxu0 0
      %1306 = vmatpush1.bf16.msra.mxu0 0
      %1307 = vmatprep.mubr.bf16.mxu0 0
      %1308 = vmatmul.mubr.bf16.gmra.mrb[0].mxu0 %v1270
      %v1309 = vpop.f32.mrb[0].mxu0
      %v1310 = vadd.f32 0.0, %v1309
      %v1311 = vpop.f32.mrb[0].mxu0
      %v1312 = vpop.f32.mrb[0].mxu0
      %v1313 = vpop.f32.mrb[0].mxu0
      %1314 = vdwg.mxu0
      %v1316 = vsel %vm989, %v1220, 0
      %v1319 = vsel %vm1225, %v843, 0
      %1321 = vmatprep.subr.bf16.mxu0 0
      %1322 = vmatpush1.bf16.msra.mxu0 %v1319
      %1323 = vmatprep.subr.bf16.mxu0 0
      %1324 = vmatpush1.bf16.msra.mxu0 0
      %1325 = vmatprep.subr.bf16.mxu0 0
      %1326 = vmatpush1.bf16.msra.mxu0 0
      %1327 = vmatprep.subr.bf16.mxu0 0
      %1328 = vmatpush1.bf16.msra.mxu0 0
      %1329 = vmatprep.subr.bf16.mxu0 0
      %1330 = vmatpush1.bf16.msra.mxu0 0
      %1331 = vmatprep.subr.bf16.mxu0 0
      %1332 = vmatpush1.bf16.msra.mxu0 0
      %1333 = vmatprep.subr.bf16.mxu0 0
      %1334 = vmatpush1.bf16.msra.mxu0 0
      %1335 = vmatprep.subr.bf16.mxu0 0
      %1336 = vmatpush1.bf16.msra.mxu0 0
      %1337 = vmatprep.subr.bf16.mxu0 0
      %1338 = vmatpush1.bf16.msra.mxu0 0
      %1339 = vmatprep.subr.bf16.mxu0 0
      %1340 = vmatpush1.bf16.msra.mxu0 0
      %1341 = vmatprep.subr.bf16.mxu0 0
      %1342 = vmatpush1.bf16.msra.mxu0 0
      %1343 = vmatprep.subr.bf16.mxu0 0
      %1344 = vmatpush1.bf16.msra.mxu0 0
      %1345 = vmatprep.subr.bf16.mxu0 0
      %1346 = vmatpush1.bf16.msra.mxu0 0
      %1347 = vmatprep.subr.bf16.mxu0 0
      %1348 = vmatpush1.bf16.msra.mxu0 0
      %1349 = vmatprep.subr.bf16.mxu0 0
      %1350 = vmatpush1.bf16.msra.mxu0 0
      %1351 = vmatprep.subr.bf16.mxu0 0
      %1352 = vmatpush1.bf16.msra.mxu0 0
      %1353 = vmatprep.mubr.bf16.mxu0 0
      %1354 = vmatmul.mubr.bf16.gmra.mrb[0].mxu0 %v1316
      %v1355 = vpop.f32.mrb[0].mxu0
      %v1356 = vadd.f32 0.0, %v1355
      %v1357 = vpop.f32.mrb[0].mxu0
      %v1358 = vpop.f32.mrb[0].mxu0
      %v1359 = vpop.f32.mrb[0].mxu0
      %1360 = vdwg.mxu0
      %v1362 = vsel %vm989, %v1221, 0
      %v1365 = vsel %vm1225, %v846, 0
      %1367 = vmatprep.subr.bf16.mxu0 0
      %1368 = vmatpush1.bf16.msra.mxu0 %v1365
      %1369 = vmatprep.subr.bf16.mxu0 0
      %1370 = vmatpush1.bf16.msra.mxu0 0
      %1371 = vmatprep.subr.bf16.mxu0 0
      %1372 = vmatpush1.bf16.msra.mxu0 0
      %1373 = vmatprep.subr.bf16.mxu0 0
      %1374 = vmatpush1.bf16.msra.mxu0 0
      %1375 = vmatprep.subr.bf16.mxu0 0
      %1376 = vmatpush1.bf16.msra.mxu0 0
      %1377 = vmatprep.subr.bf16.mxu0 0
      %1378 = vmatpush1.bf16.msra.mxu0 0
      %1379 = vmatprep.subr.bf16.mxu0 0
      %1380 = vmatpush1.bf16.msra.mxu0 0
      %1381 = vmatprep.subr.bf16.mxu0 0
      %1382 = vmatpush1.bf16.msra.mxu0 0
      %1383 = vmatprep.subr.bf16.mxu0 0
      %1384 = vmatpush1.bf16.msra.mxu0 0
      %1385 = vmatprep.subr.bf16.mxu0 0
      %1386 = vmatpush1.bf16.msra.mxu0 0
      %1387 = vmatprep.subr.bf16.mxu0 0
      %1388 = vmatpush1.bf16.msra.mxu0 0
      %1389 = vmatprep.subr.bf16.mxu0 0
      %1390 = vmatpush1.bf16.msra.mxu0 0
      %1391 = vmatprep.subr.bf16.mxu0 0
      %1392 = vmatpush1.bf16.msra.mxu0 0
      %1393 = vmatprep.subr.bf16.mxu0 0
      %1394 = vmatpush1.bf16.msra.mxu0 0
      %1395 = vmatprep.subr.bf16.mxu0 0
      %1396 = vmatpush1.bf16.msra.mxu0 0
      %1397 = vmatprep.subr.bf16.mxu0 0
      %1398 = vmatpush1.bf16.msra.mxu0 0
      %1399 = vmatprep.mubr.bf16.mxu0 0
      %1400 = vmatmul.mubr.bf16.gmra.mrb[0].mxu0 %v1362
      %v1401 = vpop.f32.mrb[0].mxu0
      %v1402 = vadd.f32 0.0, %v1401
      %v1403 = vpop.f32.mrb[0].mxu0
      %v1404 = vpop.f32.mrb[0].mxu0
      %v1405 = vpop.f32.mrb[0].mxu0
      %1406 = vdwg.mxu0
      %v1407 = vpack.c.bf16 %v1264, %v1264
      %v1409 = vunpack.c.l.s4 1983009808
      %v1410 = vunpack.c.0.s8 %v1409
      %v1411 = vlaneseq
      %v1412 = vshrl.u32 %v1411, 7
      %v1413 = vsub.s32 %v1410, %v1412
      %v1414 = vrot.slane %v1407, %v1413
      %v1415 = vpack.c.bf16 %v1356, %v1356
      %v1417 = vunpack.c.l.s4 1983009808
      %v1418 = vunpack.c.0.s8 %v1417
      %v1419 = vlaneseq
      %v1420 = vshrl.u32 %v1419, 7
      %v1421 = vsub.s32 %v1418, %v1420
      %v1422 = vrot.slane %v1415, %v1421
      %v1423 = vcombine.low %v1414, %v1422
      %v1424 = vcombine.high %v1414, %v1422
      %v1426 = vunpack.c.l.s4 1934713408
      %v1427 = vunpack.c.0.s8 %v1426
      %v1428 = vlaneseq
      %v1429 = vshrl.u32 %v1428, 7
      %v1430 = vsub.s32 %v1427, %v1429
      %v1431 = vrot.slane %v1423, %v1430
      %v1433 = vunpack.c.l.s4 1934713408
      %v1434 = vunpack.c.0.s8 %v1433
      %v1435 = vlaneseq
      %v1436 = vshrl.u32 %v1435, 7
      %v1437 = vsub.s32 %v1434, %v1436
      %v1438 = vrot.slane %v1424, %v1437
      %v1439 = vcombine.high %v1431, 0
      %v1440 = vcombine.high %v1438, 0
      %v1441 = vpack.c.bf16 %v1310, %v1310
      %v1443 = vunpack.c.l.s4 1983009808
      %v1444 = vunpack.c.0.s8 %v1443
      %v1445 = vlaneseq
      %v1446 = vshrl.u32 %v1445, 7
      %v1447 = vsub.s32 %v1444, %v1446
      %v1448 = vrot.slane %v1441, %v1447
      %v1449 = vpack.c.bf16 %v1402, %v1402
      %v1451 = vunpack.c.l.s4 1983009808
      %v1452 = vunpack.c.0.s8 %v1451
      %v1453 = vlaneseq
      %v1454 = vshrl.u32 %v1453, 7
      %v1455 = vsub.s32 %v1452, %v1454
      %v1456 = vrot.slane %v1449, %v1455
      %v1457 = vcombine.low %v1448, %v1456
      %v1458 = vcombine.high %v1448, %v1456
      %v1460 = vunpack.c.l.s4 1934713408
      %v1461 = vunpack.c.0.s8 %v1460
      %v1462 = vlaneseq
      %v1463 = vshrl.u32 %v1462, 7
      %v1464 = vsub.s32 %v1461, %v1463
      %v1465 = vrot.slane %v1457, %v1464
      %v1467 = vunpack.c.l.s4 1934713408
      %v1468 = vunpack.c.0.s8 %v1467
      %v1469 = vlaneseq
      %v1470 = vshrl.u32 %v1469, 7
      %v1471 = vsub.s32 %v1468, %v1470
      %v1472 = vrot.slane %v1458, %v1471
      %v1473 = vcombine.high %v1465, 0
      %v1474 = vcombine.high %v1472, 0
      %v1477 = vpack.i.b16 %v1465, %v1431
      %v1479 = vshrl.u32 %v1431, 16
      %v1480 = vshrl.u32 %v1465, 16
      %v1481 = vpack.i.b16 %v1480, %v1479
      %v1485 = vpack.i.b16 %v1473, %v1439
      %v1487 = vshrl.u32 %v1439, 16
      %v1488 = vshrl.u32 %v1473, 16
      %v1489 = vpack.i.b16 %v1488, %v1487
      %v1493 = vpack.i.b16 %v1472, %v1438
      %v1495 = vshrl.u32 %v1438, 16
      %v1496 = vshrl.u32 %v1472, 16
      %v1497 = vpack.i.b16 %v1496, %v1495
      %v1501 = vpack.i.b16 %v1474, %v1440
      %v1503 = vshrl.u32 %v1440, 16
      %v1504 = vshrl.u32 %v1474, 16
      %v1505 = vpack.i.b16 %v1504, %v1503
      %v1507 = vcombine.low %v1477, %v1493
      %v1509 = vunpack.c.l.s4 1983009808
      %v1510 = vunpack.c.0.s8 %v1509
      %v1511 = vlaneseq
      %v1512 = vshrl.u32 %v1511, 7
      %v1513 = vsub.s32 %v1510, %v1512
      %v1514 = vrot.slane %v1507, %v1513
      %v1515 = vcombine.low %v1485, %v1501
      %v1517 = vunpack.c.l.s4 1983009808
      %v1518 = vunpack.c.0.s8 %v1517
      %v1519 = vlaneseq
      %v1520 = vshrl.u32 %v1519, 7
      %v1521 = vsub.s32 %v1518, %v1520
      %v1522 = vrot.slane %v1515, %v1521
      %v1523 = vcombine.low %v1514, %v1522
      %v1525 = vunpack.c.l.s4 1934713408
      %v1526 = vunpack.c.0.s8 %v1525
      %v1527 = vlaneseq
      %v1528 = vshrl.u32 %v1527, 7
      %v1529 = vsub.s32 %v1526, %v1528
      %v1530 = vrot.slane %v1523, %v1529
      %v1531 = vcombine.high %v1530, 0
      %v1532 = vcombine.low %v1481, %v1497
      %v1534 = vunpack.c.l.s4 1983009808
      %v1535 = vunpack.c.0.s8 %v1534
      %v1536 = vlaneseq
      %v1537 = vshrl.u32 %v1536, 7
      %v1538 = vsub.s32 %v1535, %v1537
      %v1539 = vrot.slane %v1532, %v1538
      %v1540 = vcombine.low %v1489, %v1505
      %v1542 = vunpack.c.l.s4 1983009808
      %v1543 = vunpack.c.0.s8 %v1542
      %v1544 = vlaneseq
      %v1545 = vshrl.u32 %v1544, 7
      %v1546 = vsub.s32 %v1543, %v1545
      %v1547 = vrot.slane %v1540, %v1546
      %v1548 = vcombine.low %v1539, %v1547
      %v1550 = vunpack.c.l.s4 1934713408
      %v1551 = vunpack.c.0.s8 %v1550
      %v1552 = vlaneseq
      %v1553 = vshrl.u32 %v1552, 7
      %v1554 = vsub.s32 %v1551, %v1553
      %v1555 = vrot.slane %v1548, %v1554
      %v1556 = vcombine.high %v1555, 0
      %v1559 = vpack.i.b16 %v1555, %v1530
      %v1560 = vshrl.u32 %v1530, 16
      %v1561 = vshrl.u32 %v1555, 16
      %v1562 = vpack.i.b16 %v1561, %v1560
      %v1565 = vpack.i.b16 %v1556, %v1531
      %v1566 = vshrl.u32 %v1531, 16
      %v1567 = vshrl.u32 %v1556, 16
      %v1568 = vpack.i.b16 %v1567, %v1566
      %1569 = vrot.lane.b32.xlu0 %v1562, 8
      %v1570 = vpop.permute.xlu0 %1569
      %1571 = vrot.lane.b32.xlu0 %v1565, 16
      %v1572 = vpop.permute.xlu0 %1571
      %1573 = vrot.lane.b32.xlu0 %v1568, 24
      %v1574 = vpop.permute.xlu0 %1573
      %v1577 = vsel %vm989, %v1559, %v1570
      %vm1578 = vcmask 130048
      %v1580 = vsel %vm1578, %v1577, %v1572
      %vm1581 = vcmask 195584
      %v1583 = vsel %vm1581, %v1580, %v1574
      %v1584 = vld [vmem:[%s5] sm:$0xf]
      %v1585 = vld [vmem:[%s5 + $0x4] sm:$0xf]
      %v1586 = vld [vmem:[%s5 + $0x8] sm:$0xf]
      %v1587 = vld [vmem:[%s5 + $0xc] sm:$0xf]
      %v1588 = vld [vmem:[%s6] sm:$0x1]
      %v1590 = vlaneseq
      %v1591 = vshrl.u32 %v1590, 7
      %v1592 = vsub.s32 0, %v1591
      %v1593 = vrot.slane %v1588, %v1592
      %v1599 = vunpack.c.l.b16 %v1584
      %v1600 = vunpack.c.l.b16 %v1585
      %v1601 = vunpack.c.l.b16 %v1586
      %v1602 = vunpack.c.l.b16 %v1587
      %v1603 = vpack.c.b16 %v1600, %v1599
      %v1604 = vpack.c.b16 %v1602, %v1601
      %v1607 = vsel %vm440, %v1583, 0
      %1609 = vmatprep.subr.bf16.mxu0 0
      %1610 = vmatpush1.bf16.msra.mxu0 %v1603
      %1611 = vmatprep.subr.bf16.mxu0 0
      %1612 = vmatpush1.bf16.msra.mxu0 %v1604
      %1613 = vmatprep.subr.bf16.mxu0 0
      %1614 = vmatpush1.bf16.msra.mxu0 0
      %1615 = vmatprep.subr.bf16.mxu0 0
      %1616 = vmatpush1.bf16.msra.mxu0 0
      %1617 = vmatprep.subr.bf16.mxu0 0
      %1618 = vmatpush1.bf16.msra.mxu0 0
      %1619 = vmatprep.subr.bf16.mxu0 0
      %1620 = vmatpush1.bf16.msra.mxu0 0
      %1621 = vmatprep.subr.bf16.mxu0 0
      %1622 = vmatpush1.bf16.msra.mxu0 0
      %1623 = vmatprep.subr.bf16.mxu0 0
      %1624 = vmatpush1.bf16.msra.mxu0 0
      %1625 = vmatprep.subr.bf16.mxu0 0
      %1626 = vmatpush1.bf16.msra.mxu0 0
      %1627 = vmatprep.subr.bf16.mxu0 0
      %1628 = vmatpush1.bf16.msra.mxu0 0
      %1629 = vmatprep.subr.bf16.mxu0 0
      %1630 = vmatpush1.bf16.msra.mxu0 0
      %1631 = vmatprep.subr.bf16.mxu0 0
      %1632 = vmatpush1.bf16.msra.mxu0 0
      %1633 = vmatprep.subr.bf16.mxu0 0
      %1634 = vmatpush1.bf16.msra.mxu0 0
      %1635 = vmatprep.subr.bf16.mxu0 0
      %1636 = vmatpush1.bf16.msra.mxu0 0
      %1637 = vmatprep.subr.bf16.mxu0 0
      %1638 = vmatpush1.bf16.msra.mxu0 0
      %1639 = vmatprep.subr.bf16.mxu0 0
      %1640 = vmatpush1.bf16.msra.mxu0 0
      %1641 = vmatprep.mubr.bf16.mxu0 0
      %1642 = vmatmul.mubr.bf16.gmra.mrb[0].mxu0 %v1607
      %v1643 = vpop.f32.mrb[0].mxu0
      %v1644 = vadd.f32 %v1593, %v1643
      %v1645 = vpop.f32.mrb[0].mxu0
      %v1646 = vpop.f32.mrb[0].mxu0
      %v1647 = vpop.f32.mrb[0].mxu0
      %1648 = vdwg.mxu0
      %v1649 = vld [vmem:[%s431] sm:$0xff]
      %v1650 = vadd.f32 %v1649, %v1644
      %v1651 = vld [vmem:[%s7] sm:$0x1]
      %v1652 = vld [vmem:[%s8] sm:$0x1]
      %v1653 = vsel %vm440, %v1650, 0.0
      %1654 = vadd.xlane.f32.xlu0 %v1653
      %v1655 = vpop.xlane.xlu0 %1654
      %v1656 = vmul.f32 %v1655, %v444
      %v1657 = vsub.f32 %v1650, %v1656
      %v1658 = vmul.f32 %v1657, %v1657
      %v1659 = vsel %vm440, %v1658, 0.0
      %1660 = vadd.xlane.f32.xlu0 %v1659
      %v1661 = vpop.xlane.xlu0 %1660
      %v1662 = vmul.f32 %v1661, %v444
      %v1663 = vadd.f32 %v1662, 1e-05
      %v1664 = vrsqrt.pop %v1663
      %v1665 = vmul.f32 %v1657, %v1664
      %v1667 = vlaneseq
      %v1668 = vshrl.u32 %v1667, 7
      %v1669 = vsub.s32 0, %v1668
      %v1670 = vrot.slane %v1651, %v1669
      %v1672 = vmul.f32 %v1665, %v1670
      %v1674 = vlaneseq
      %v1675 = vshrl.u32 %v1674, 7
      %v1676 = vsub.s32 0, %v1675
      %v1677 = vrot.slane %v1652, %v1676
      %v1679 = vadd.f32 %v1672, %v1677
      %v1680 = vpack.c.bf16 %v1679, %v1679
      %v1681 = vld [vmem:[%s9] sm:$0xf]
      %v1682 = vld [vmem:[%s9 + $0x4] sm:$0xf]
      %v1683 = vld [vmem:[%s9 + $0x8] sm:$0xf]
      %v1684 = vld [vmem:[%s9 + $0xc] sm:$0xf]
      %v1685 = vld [vmem:[%s10] sm:$0x1]
      %v1687 = vlaneseq
      %v1688 = vshrl.u32 %v1687, 7
      %v1689 = vsub.s32 0, %v1688
      %v1690 = vrot.slane %v1685, %v1689
      %v1696 = vunpack.c.l.b16 %v1681
      %v1697 = vunpack.c.l.b16 %v1682
      %v1698 = vunpack.c.l.b16 %v1683
      %v1699 = vunpack.c.l.b16 %v1684
      %v1700 = vpack.c.b16 %v1697, %v1696
      %v1701 = vpack.c.b16 %v1699, %v1698
      %v1705 = vsel %vm440, %v1680, 0
      %1707 = vmatprep.subr.bf16.mxu0 0
      %1708 = vmatpush1.bf16.msra.mxu0 %v1700
      %1709 = vmatprep.subr.bf16.mxu0 0
      %1710 = vmatpush1.bf16.msra.mxu0 %v1701
      %1711 = vmatprep.subr.bf16.mxu0 0
      %1712 = vmatpush1.bf16.msra.mxu0 0
      %1713 = vmatprep.subr.bf16.mxu0 0
      %1714 = vmatpush1.bf16.msra.mxu0 0
      %1715 = vmatprep.subr.bf16.mxu0 0
      %1716 = vmatpush1.bf16.msra.mxu0 0
      %1717 = vmatprep.subr.bf16.mxu0 0
      %1718 = vmatpush1.bf16.msra.mxu0 0
      %1719 = vmatprep.subr.bf16.mxu0 0
      %1720 = vmatpush1.bf16.msra.mxu0 0
      %1721 = vmatprep.subr.bf16.mxu0 0
      %1722 = vmatpush1.bf16.msra.mxu0 0
      %1723 = vmatprep.subr.bf16.mxu0 0
      %1724 = vmatpush1.bf16.msra.mxu0 0
      %1725 = vmatprep.subr.bf16.mxu0 0
      %1726 = vmatpush1.bf16.msra.mxu0 0
      %1727 = vmatprep.subr.bf16.mxu0 0
      %1728 = vmatpush1.bf16.msra.mxu0 0
      %1729 = vmatprep.subr.bf16.mxu0 0
      %1730 = vmatpush1.bf16.msra.mxu0 0
      %1731 = vmatprep.subr.bf16.mxu0 0
      %1732 = vmatpush1.bf16.msra.mxu0 0
      %1733 = vmatprep.subr.bf16.mxu0 0
      %1734 = vmatpush1.bf16.msra.mxu0 0
      %1735 = vmatprep.subr.bf16.mxu0 0
      %1736 = vmatpush1.bf16.msra.mxu0 0
      %1737 = vmatprep.subr.bf16.mxu0 0
      %1738 = vmatpush1.bf16.msra.mxu0 0
      %1739 = vmatprep.mubr.bf16.mxu0 0
      %1740 = vmatmul.mubr.bf16.gmra.mrb[0].mxu0 %v1705
      %v1741 = vpop.f32.mrb[0].mxu0
      %v1742 = vadd.f32 %v1690, %v1741
      %v1743 = vpop.f32.mrb[0].mxu0
      %v1744 = vpop.f32.mrb[0].mxu0
      %v1745 = vpop.f32.mrb[0].mxu0
      %1746 = vdwg.mxu0
      %v1747 = vmul.f32 %v1742, 1.702
      %v1748 = vxor.u32 %v1747, 2147483648
      %v1749 = vmul.f32 %v1748, 1.442695
      %v1750 = vpow.pop %v1749
      %v1751 = vadd.f32 %v1750, 1.0
      %v1752 = vrcp.pop %v1751
      %v1753 = vmul.f32 1.0, %v1752
      %v1754 = vmul.f32 %v1742, %v1753
      %v1755 = vpack.c.bf16 %v1754, %v1754
      %v1756 = vld [vmem:[%s11] sm:$0xf]
      %v1757 = vld [vmem:[%s11 + $0x4] sm:$0xf]
      %v1758 = vld [vmem:[%s11 + $0x8] sm:$0xf]
      %v1759 = vld [vmem:[%s11 + $0xc] sm:$0xf]
      %v1760 = vld [vmem:[%s11 + $0x10] sm:$0xf]
      %v1761 = vld [vmem:[%s11 + $0x14] sm:$0xf]
      %v1762 = vld [vmem:[%s11 + $0x18] sm:$0xf]
      %v1763 = vld [vmem:[%s11 + $0x1c] sm:$0xf]
      %v1764 = vld [vmem:[%s11 + $0x20] sm:$0xf]
      %v1765 = vld [vmem:[%s11 + $0x24] sm:$0xf]
      %v1766 = vld [vmem:[%s11 + $0x28] sm:$0xf]
      %v1767 = vld [vmem:[%s11 + $0x2c] sm:$0xf]
      %v1768 = vld [vmem:[%s11 + $0x30] sm:$0xf]
      %v1769 = vld [vmem:[%s11 + $0x34] sm:$0xf]
      %v1770 = vld [vmem:[%s11 + $0x38] sm:$0xf]
      %v1771 = vld [vmem:[%s11 + $0x3c] sm:$0xf]
      %v1772 = vld [vmem:[%s12] sm:$0x1]
      %v1774 = vlaneseq
      %v1775 = vshrl.u32 %v1774, 7
      %v1776 = vsub.s32 0, %v1775
      %v1777 = vrot.slane %v1772, %v1776
      %v1795 = vunpack.c.l.b16 %v1756
      %v1796 = vunpack.c.l.b16 %v1757
      %v1797 = vunpack.c.l.b16 %v1758
      %v1798 = vunpack.c.l.b16 %v1759
      %v1799 = vunpack.c.l.b16 %v1760
      %v1800 = vunpack.c.l.b16 %v1761
      %v1801 = vunpack.c.l.b16 %v1762
      %v1802 = vunpack.c.l.b16 %v1763
      %v1803 = vunpack.c.l.b16 %v1764
      %v1804 = vunpack.c.l.b16 %v1765
      %v1805 = vunpack.c.l.b16 %v1766
      %v1806 = vunpack.c.l.b16 %v1767
      %v1807 = vunpack.c.l.b16 %v1768
      %v1808 = vunpack.c.l.b16 %v1769
      %v1809 = vunpack.c.l.b16 %v1770
      %v1810 = vunpack.c.l.b16 %v1771
      %v1811 = vpack.c.b16 %v1796, %v1795
      %v1812 = vpack.c.b16 %v1798, %v1797
      %v1813 = vpack.c.b16 %v1800, %v1799
      %v1814 = vpack.c.b16 %v1802, %v1801
      %v1815 = vpack.c.b16 %v1804, %v1803
      %v1816 = vpack.c.b16 %v1806, %v1805
      %v1817 = vpack.c.b16 %v1808, %v1807
      %v1818 = vpack.c.b16 %v1810, %v1809
      %1827 = vmatprep.subr.bf16.mxu0 0
      %1828 = vmatpush1.bf16.msra.mxu0 %v1811
      %1829 = vmatprep.subr.bf16.mxu0 0
      %1830 = vmatpush1.bf16.msra.mxu0 %v1812
      %1831 = vmatprep.subr.bf16.mxu0 0
      %1832 = vmatpush1.bf16.msra.mxu0 %v1813
      %1833 = vmatprep.subr.bf16.mxu0 0
      %1834 = vmatpush1.bf16.msra.mxu0 %v1814
      %1835 = vmatprep.subr.bf16.mxu0 0
      %1836 = vmatpush1.bf16.msra.mxu0 %v1815
      %1837 = vmatprep.subr.bf16.mxu0 0
      %1838 = vmatpush1.bf16.msra.mxu0 %v1816
      %1839 = vmatprep.subr.bf16.mxu0 0
      %1840 = vmatpush1.bf16.msra.mxu0 %v1817
      %1841 = vmatprep.subr.bf16.mxu0 0
      %1842 = vmatpush1.bf16.msra.mxu0 %v1818
      %1843 = vmatprep.subr.bf16.mxu0 0
      %1844 = vmatpush1.bf16.msra.mxu0 0
      %1845 = vmatprep.subr.bf16.mxu0 0
      %1846 = vmatpush1.bf16.msra.mxu0 0
      %1847 = vmatprep.subr.bf16.mxu0 0
      %1848 = vmatpush1.bf16.msra.mxu0 0
      %1849 = vmatprep.subr.bf16.mxu0 0
      %1850 = vmatpush1.bf16.msra.mxu0 0
      %1851 = vmatprep.subr.bf16.mxu0 0
      %1852 = vmatpush1.bf16.msra.mxu0 0
      %1853 = vmatprep.subr.bf16.mxu0 0
      %1854 = vmatpush1.bf16.msra.mxu0 0
      %1855 = vmatprep.subr.bf16.mxu0 0
      %1856 = vmatpush1.bf16.msra.mxu0 0
      %1857 = vmatprep.subr.bf16.mxu0 0
      %1858 = vmatpush1.bf16.msra.mxu0 0
      %1859 = vmatprep.mubr.bf16.mxu0 0
      %1860 = vmatmul.mubr.bf16.gmra.mrb[0].mxu0 %v1755
      %v1861 = vpop.f32.mrb[0].mxu0
      %v1862 = vadd.f32 %v1777, %v1861
      %v1863 = vpop.f32.mrb[0].mxu0
      %v1864 = vpop.f32.mrb[0].mxu0
      %v1865 = vpop.f32.mrb[0].mxu0
      %1866 = vdwg.mxu0
      %v1867 = vadd.f32 %v1650, %v1862
      %1868 = vst.msk [vmem:[%s435] sm:$0xff] %vm440, %v1867
      %p1869 = scmp.lt.s32.totalorder %s24, 1
      %s1870 = scalar_select %p1869, %s24, 1
      %s1871 = smul.addr %s1870, 8
      %s1872 = scalar_lea.vmem %s13, %s1871
      // Predicated region
      $region73: #{transformer_forward.2} parent=71 // pred_check
        %p1873 = pneg %p320
      $region74: #{transformer_forward.2} parent=71 // pred_check_branch
        %1875 = sbr.rel (%p1873) target = $region76
      $region75: #{transformer_forward.2} parent=71 // pred_region
        _
      $region76: #{transformer_forward.2} parent=71 // pred_fallthru
        _
    $region72: #{transformer_forward.2} parent=5 // pred_fallthru
      _
    %p1876 = scmp.le.s32.totalorder 2, %s19
    // Predicated region
    $region77: #{transformer_forward.2} parent=5 // pred_check
      %p1877 = pneg %p1876
    $region78: #{transformer_forward.2} parent=5 // pred_check_branch
      %1879 = sbr.rel (%p1877) target = $region80
    $region79: #{transformer_forward.2} parent=5 // pred_region
      %s1880 = ssub.s32 %s19, 2
      // Predicated region
      $region81: #{transformer_forward.2} parent=79 // pred_check
        %p1881 = pneg %p326
      $region82: #{transformer_forward.2} parent=79 // pred_check_branch
        %1883 = sbr.rel (%p1881) target = $region84
      $region83: #{transformer_forward.2} parent=79 // pred_region
        %p1884 = scmp.lt.s32.totalorder %s25, 1
        %s1885 = scalar_select %p1884, %s25, 1
        %s1886 = smul.addr %s1885, 8
        %s1887 = scalar_lea.vmem %s13, %s1886
      $region84: #{transformer_forward.2} parent=79 // pred_fallthru
        _
    $region80: #{transformer_forward.2} parent=5 // pred_fallthru
      _
  $region6: #{transformer_forward.2} parent=0 // loop_footer
    %s23 = sadd.s32 1, %s19
  $region7: #{transformer_forward.2} parent=0 // loop_footer_branch
    %18 = sbr.rel target = $region3
  $region8: #{transformer_forward.2} parent=0 // loop_exit
    _

</llo_original>
